<compile_context>
chip_gen: v7x
topology: tpu7x:2x2x1
jax: 0.10.0
libtpu: 0.0.40
codegen_flags: <defaults>
</compile_context>

<pallas_src>
import functools

import jax
import jax.numpy as jnp
from jax import lax
from jax.experimental import pallas as pl
from jax.experimental.pallas import tpu as pltpu

EPS = 1e-10
_FWD_MXU_DTYPE = jnp.bfloat16   # forward (analysis + folded-mask) matmul operands
# iSTFT matmul stays f32: MXU has slack, accuracy recovered for free.


def _round_up(x, m):
    return (x + m - 1) // m * m


def _hann(n_fft):
    # torch.hann_window default: periodic
    return 0.5 - 0.5 * jnp.cos(2.0 * jnp.pi * jnp.arange(n_fft) / n_fft)


def _sigmoid(x):
    return 1.0 / (1.0 + jnp.exp(-x))


# ----------------------------------------------------------------------------
# fused kernel: extended STFT matmul -> mask stage -> iSTFT matmuls (all VMEM)
# ----------------------------------------------------------------------------
def _fused_kernel(frames_ref, fwd_ref, const_ref, invr_ref, invi_ref, out_ref,
                  *, Fp):
    # One MXU matmul yields, per lane-padded frequency bin:
    #   re, im, re[f-1], im[f-1], re[f+1], im[f+1],
    #   mag_mask{0,1,2}, real_mask, imag_mask pre-activations
    # (projection + every (3,1) frequency conv is folded into the basis).
    spec = jnp.dot(frames_ref[...], fwd_ref[...],
                   preferred_element_type=jnp.float32) + const_ref[...]

    def col(i):                      # 128-lane-aligned slices (no copies)
        return spec[:, i * Fp:(i + 1) * Fp]

    re, im = col(0), col(1)
    re_m, im_m = col(2), col(3)
    re_p, im_p = col(4), col(5)
    mm0, mm1, mm2 = col(6), col(7), col(8)
    rmask, imask = col(9), col(10)

    # magnitude path: eye(3) kernel == frequency-shifted |X|, sigmoid-gated
    ssq = re * re + im * im
    mag = jnp.sqrt(ssq)
    mag_m = jnp.sqrt(re_m * re_m + im_m * im_m)   # |X|[f-1] (0 at f=0)
    mag_p = jnp.sqrt(re_p * re_p + im_p * im_p)   # |X|[f+1] (0 at f=F-1)
    mag_g = (mag_m * _sigmoid(mm0) + mag * _sigmoid(mm1) + mag_p * _sigmoid(mm2))

    # phase path (trig identities; rsqrt on the EUP instead of sqrt+recip)
    mmag = jnp.sqrt(jnp.maximum(rmask * rmask + imask * imask, EPS))
    rr = rmask + EPS
    ii = imask + EPS
    inv_r = lax.rsqrt(jnp.maximum(rr * rr + ii * ii, 1e-30))
    cos_pm = rr * inv_r
    sin_pm = ii * inv_r

    # clamp-only guard (no redundant where); bins with re=im=0 exactly give
    # yr=yi=0 instead of amp*cos/sin(pha_mask) -- measure-zero deviation.
    inv_mag = lax.rsqrt(jnp.maximum(ssq, 1e-30))
    cos_p = re * inv_mag
    sin_p = im * inv_mag

    amp = mag_g * jnp.tanh(mmag)
    yr = amp * (cos_p * cos_pm - sin_p * sin_pm)
    yi = amp * (sin_p * cos_pm + cos_p * sin_pm)

    # iSTFT: two f32 MXU dots (no concat buffer).  Pad-lane garbage in yr/yi
    # is annihilated by the exactly-zero pad rows of the inverse bases.
    out_ref[...] = (
        jnp.dot(yr, invr_ref[...], preferred_element_type=jnp.float32)
        + jnp.dot(yi, invi_ref[...], preferred_element_type=jnp.float32))


# ----------------------------------------------------------------------------
# basis construction (window, projection and conv weights folded in)
# ----------------------------------------------------------------------------
def _build_bases(n_fft, F, Fp, params):
    assert n_fft % 2 == 0, "irfft coefficient construction assumes even n_fft"
    f32 = jnp.float32
    n = jnp.arange(n_fft, dtype=f32)[:, None]
    f = jnp.arange(F, dtype=f32)[None, :]
    ang = 2.0 * jnp.pi * n * f / n_fft            # (n_fft, F)
    win = _hann(n_fft).astype(f32)

    cosB = jnp.cos(ang) * win[:, None]            # re = frames @ cosB
    sinB = -jnp.sin(ang) * win[:, None]           # im = frames @ sinB

    def shift_cols(B, s):
        # S[:, f] = B[:, f-s] if 0 <= f-s < F else 0  (Conv2d zero padding)
        z = jnp.zeros((n_fft, abs(s)), f32)
        if s > 0:
            return jnp.concatenate([z, B[:, :F - s]], axis=1)
        return jnp.concatenate([B[:, -s:], z], axis=1)

    cos_sh = (shift_cols(cosB, 1), cosB, shift_cols(cosB, -1))   # f-1, f, f+1
    sin_sh = (shift_cols(sinB, 1), sinB, shift_cols(sinB, -1))
    fi = jnp.arange(F)
    valid = (jnp.asarray(fi >= 1, f32), jnp.ones((F,), f32),
             jnp.asarray(fi <= F - 2, f32))

    pw, pb = params["proj_w"], params["proj_b"]

    def mask_basis(w, bias, o):
        # Conv2d(4, Cout, (3,1), padding=(1,0)) applied to the projected
        # features, folded into basis columns (linear part in re/im) plus a
        # per-frequency constant (bias + projection bias through the conv,
        # with correct zero padding at the frequency edges).
        M = jnp.zeros((n_fft, F), f32)
        C = jnp.full((F,), bias, f32)
        for c in range(4):
            for k in range(3):           # k=0 -> f-1, k=1 -> f, k=2 -> f+1
                wk = w[(o * 4 + c) * 3 + k]
                M = M + wk * (pw[2 * c] * cos_sh[k] + pw[2 * c + 1] * sin_sh[k])
                C = C + wk * pb[c] * valid[k]
        return M, C

    cols, consts = [], []
    for B in (cosB, sinB, cos_sh[0], sin_sh[0], cos_sh[2], sin_sh[2]):
        cols.append(B)
        consts.append(jnp.zeros((F,), f32))
    for o in range(3):
        M, C = mask_basis(params["mag_w"], params["mag_b"][o], o)
        cols.append(M), consts.append(C)
    for nm in ("real", "imag"):
        M, C = mask_basis(params[nm + "_w"], params[nm + "_b"][0], 0)
        cols.append(M), consts.append(C)

    zcol = jnp.zeros((n_fft, Fp - F), f32)        # exact-zero pad lanes
    fwd = jnp.concatenate([jnp.concatenate([c, zcol], axis=1) for c in cols],
                          axis=1)                 # (n_fft, 11*Fp)
    cpad = jnp.zeros((Fp - F,), f32)
    const = jnp.concatenate([jnp.concatenate([c, cpad]) for c in consts]
                            )[None, :]            # (1, 11*Fp)

    # irfft coefficients (1/N for DC & Nyquist, 2/N otherwise) + synth window
    c = jnp.full((F, 1), 2.0, f32).at[0, 0].set(1.0).at[F - 1, 0].set(1.0) / n_fft
    inv_re = c * jnp.cos(ang.T) * win[None, :]    # (F, n_fft)
    inv_im = -c * jnp.sin(ang.T) * win[None, :]
    zrow = jnp.zeros((Fp - F, n_fft), f32)        # exact-zero pad rows
    inv_re = jnp.concatenate([inv_re, zrow], axis=0)
    inv_im = jnp.concatenate([inv_im, zrow], axis=0)
    return fwd, const, inv_re, inv_im


# ----------------------------------------------------------------------------
# full MTFAA_helper forward
# ----------------------------------------------------------------------------
def mtfaa_helper_forward(x, params, n_fft, n_hop):
    B, L = x.shape
    F = n_fft // 2 + 1
    Fp = _round_up(F, 128)
    pad = n_fft // 2
    assert n_fft % n_hop == 0, "dense framing / OLA assumes hop divides n_fft"
    r = n_fft // n_hop

    # framing (torch.stft defaults: center=True, reflect pad, periodic hann)
    # built from dense strided slices -- no XLA gather (perf-review item).
    xp = jnp.pad(x, ((0, 0), (pad, pad)), mode="reflect")
    T = 1 + (L + 2 * pad - n_fft) // n_hop
    nchunk = T + r - 1
    chunks = xp[:, :nchunk * n_hop].reshape(B, nchunk, n_hop)
    frames = jnp.concatenate([chunks[:, j:j + T, :] for j in range(r)],
                             axis=2).reshape(B * T, n_fft)

    # row tiling: lane-dense tiles, even grid-step count (v7x has 2 TCs),
    # per-chip TM / VMEM caps (128 MiB VMEM on v5e/v6e allows bigger tiles).
    M = B * T
    kind = ""
    try:
        kind = jax.devices()[0].device_kind.lower()
    except Exception:
        pass
    big_vmem = ("v5" in kind) or ("v6" in kind)
    tm_cap = 512 if big_vmem else 256
    vmem_limit = (64 if big_vmem else 32) * 1024 * 1024
    grid = max(2, pl.cdiv(M, tm_cap))
    grid += grid % 2                              # even grid for v7x megacore
    TM = _round_up(pl.cdiv(M, grid), 8)
    Mp = TM * grid
    frames = jnp.pad(frames, ((0, Mp - M), (0, 0))).astype(_FWD_MXU_DTYPE)

    fwd, const, inv_re, inv_im = _build_bases(n_fft, F, Fp, params)
    fwd = fwd.astype(_FWD_MXU_DTYPE)
    NCOL = 11 * Fp

    single = pl.Buffered(buffer_count=1)   # constant index_map: no double buf
    out_frames = pl.pallas_call(
        functools.partial(_fused_kernel, Fp=Fp),
        grid=(grid,),
        in_specs=[
            pl.BlockSpec((TM, n_fft), lambda i: (i, 0)),                 # frames
            pl.BlockSpec((n_fft, NCOL), lambda i: (0, 0),
                         pipeline_mode=single),                          # fwd
            pl.BlockSpec((1, NCOL), lambda i: (0, 0),
                         pipeline_mode=single),                          # const
            pl.BlockSpec((Fp, n_fft), lambda i: (0, 0),
                         pipeline_mode=single),                          # inv_re
            pl.BlockSpec((Fp, n_fft), lambda i: (0, 0),
                         pipeline_mode=single),                          # inv_im
        ],
        out_specs=pl.BlockSpec((TM, n_fft), lambda i: (i, 0)),
        out_shape=jax.ShapeDtypeStruct((Mp, n_fft), jnp.float32),
        compiler_params=pltpu.CompilerParams(
            dimension_semantics=("parallel",),
            vmem_limit_bytes=vmem_limit),
    )(frames, fwd, const, inv_re, inv_im)

    # overlap-add + squared-window normalization (torch.istft, center=True),
    # done with dense shifted adds instead of a scatter-add (perf-review item).
    # TODO(synk): OLA stays in plain (dense) XLA rather than a second Pallas
    # kernel; it is pure HBM-bandwidth work at these sizes.
    of = out_frames[:M].reshape(B, T, r, n_hop)
    Tc = T + r - 1
    win = _hann(n_fft).astype(jnp.float32)
    wsq = (win * win).reshape(r, n_hop)
    y = jnp.zeros((B, Tc, n_hop), jnp.float32)
    env = jnp.zeros((Tc, n_hop), jnp.float32)
    for j in range(r):
        y = y + jnp.pad(of[:, :, j, :], ((0, 0), (j, r - 1 - j), (0, 0)))
        env = env + jnp.pad(jnp.broadcast_to(wsq[j], (T, n_hop)),
                            ((j, r - 1 - j), (0, 0)))
    Lout = (T - 1) * n_hop                        # torch.istft default length
    y = y.reshape(B, Tc * n_hop)[:, pad:pad + Lout]
    env = env.reshape(Tc * n_hop)[pad:pad + Lout]
    return y / jnp.maximum(env, 1e-11)


def init_params(key):
    ks = jax.random.split(key, 8)
    f32 = jnp.float32
    return {
        # stand-in 1x1 projection 2ch -> 4ch (see TODO(synk) at top)
        "proj_w": 0.3 * jax.random.normal(ks[0], (8,), f32),
        "proj_b": 0.1 * jax.random.normal(ks[1], (4,), f32),
        # Conv2d(4, 3, (3,1), padding=(1,0)) -> flattened (o, c, kh)
        "mag_w": 0.2 * jax.random.normal(ks[2], (36,), f32),
        "mag_b": 0.05 * jax.random.normal(ks[3], (3,), f32),
        # Conv2d(4, 1, (3,1), padding=(1,0))
        "real_w": 0.2 * jax.random.normal(ks[4], (12,), f32),
        "real_b": 0.05 * jax.random.normal(ks[5], (1,), f32),
        "imag_w": 0.2 * jax.random.normal(ks[6], (12,), f32),
        "imag_b": 0.05 * jax.random.normal(ks[7], (1,), f32),
    }


if __name__ == "__main__":
    n_fft, n_hop = 128, 32            # small demo shapes: F = 65, T = 33
    key = jax.random.PRNGKey(0)
    kx, kp = jax.random.split(key)
    x = jax.random.normal(kx, (2, 1024), jnp.float32)
    params = init_params(kp)

    fwd_fn = jax.jit(lambda xx: mtfaa_helper_forward(xx, params, n_fft, n_hop))
    y = fwd_fn(x)
    jax.block_until_ready(y)
    assert y.shape == (2, 1024) and y.dtype == jnp.float32
    assert bool(jnp.all(jnp.isfinite(y)))
    print("KERNEL_OK")
</pallas_src>

<mosaic_0001>
module attributes {stable_mosaic.version = 11 : i64} {
  func.func @_fused_kernel(%arg0: i32, %arg1: memref<40x128xbf16, #tpu.memory_space<vmem>>, %arg2: memref<128x1408xbf16, #tpu.memory_space<vmem>>, %arg3: memref<1x1408xf32, #tpu.memory_space<vmem>>, %arg4: memref<128x128xf32, #tpu.memory_space<vmem>>, %arg5: memref<128x128xf32, #tpu.memory_space<vmem>>, %arg6: memref<40x128xf32, #tpu.memory_space<vmem>>) attributes {dimension_semantics = [#tpu.dimension_semantics<parallel>], iteration_bounds = array<i64: 2>, scalar_prefetch = 0 : i64, scratch_operands = 0 : i64, tpu.core_type = #tpu.core_type<tc>, window_params = [{transform_indices = @transform_0, window_bounds = array<i64: 40, 128>}, {pipeline_mode = #tpu.pipeline_mode<synchronous>, transform_indices = @transform_1, window_bounds = array<i64: 128, 1408>}, {pipeline_mode = #tpu.pipeline_mode<synchronous>, transform_indices = @transform_2, window_bounds = array<i64: 1, 1408>}, {pipeline_mode = #tpu.pipeline_mode<synchronous>, transform_indices = @transform_3, window_bounds = array<i64: 128, 128>}, {pipeline_mode = #tpu.pipeline_mode<synchronous>, transform_indices = @transform_4, window_bounds = array<i64: 128, 128>}, {transform_indices = @transform_5, window_bounds = array<i64: 40, 128>}]} {
    %c0 = arith.constant 0 : index
    %c0_0 = arith.constant 0 : index
    %0 = vector.load %arg1[%c0, %c0_0] : memref<40x128xbf16, #tpu.memory_space<vmem>>, vector<40x128xbf16>
    %c0_1 = arith.constant 0 : index
    %c0_2 = arith.constant 0 : index
    %1 = vector.load %arg2[%c0_1, %c0_2] : memref<128x1408xbf16, #tpu.memory_space<vmem>>, vector<128x1408xbf16>
    %cst = arith.constant dense<0.000000e+00> : vector<40x1408xf32>
    %2 = tpu.matmul %0, %1, %cst {dimension_numbers = #tpu.dot_dimension_numbers<[1], [0], [0], [1], [0, 0, 1, 1], [], []>} : vector<40x128xbf16>, vector<128x1408xbf16>, vector<40x1408xf32> -> vector<40x1408xf32>
    %c0_3 = arith.constant 0 : index
    %c0_4 = arith.constant 0 : index
    %3 = vector.load %arg3[%c0_3, %c0_4] : memref<1x1408xf32, #tpu.memory_space<vmem>>, vector<1x1408xf32>
    %4 = vector.broadcast %3 : vector<1x1408xf32> to vector<40x1408xf32>
    %5 = arith.addf %2, %4 : vector<40x1408xf32>
    %6 = vector.extract_strided_slice %5 {offsets = [0, 0], sizes = [40, 128], strides = [1, 1]} : vector<40x1408xf32> to vector<40x128xf32>
    %7 = vector.extract_strided_slice %5 {offsets = [0, 128], sizes = [40, 128], strides = [1, 1]} : vector<40x1408xf32> to vector<40x128xf32>
    %8 = vector.extract_strided_slice %5 {offsets = [0, 256], sizes = [40, 128], strides = [1, 1]} : vector<40x1408xf32> to vector<40x128xf32>
    %9 = vector.extract_strided_slice %5 {offsets = [0, 384], sizes = [40, 128], strides = [1, 1]} : vector<40x1408xf32> to vector<40x128xf32>
    %10 = vector.extract_strided_slice %5 {offsets = [0, 512], sizes = [40, 128], strides = [1, 1]} : vector<40x1408xf32> to vector<40x128xf32>
    %11 = vector.extract_strided_slice %5 {offsets = [0, 640], sizes = [40, 128], strides = [1, 1]} : vector<40x1408xf32> to vector<40x128xf32>
    %12 = vector.extract_strided_slice %5 {offsets = [0, 768], sizes = [40, 128], strides = [1, 1]} : vector<40x1408xf32> to vector<40x128xf32>
    %13 = vector.extract_strided_slice %5 {offsets = [0, 896], sizes = [40, 128], strides = [1, 1]} : vector<40x1408xf32> to vector<40x128xf32>
    %14 = vector.extract_strided_slice %5 {offsets = [0, 1024], sizes = [40, 128], strides = [1, 1]} : vector<40x1408xf32> to vector<40x128xf32>
    %15 = vector.extract_strided_slice %5 {offsets = [0, 1152], sizes = [40, 128], strides = [1, 1]} : vector<40x1408xf32> to vector<40x128xf32>
    %16 = vector.extract_strided_slice %5 {offsets = [0, 1280], sizes = [40, 128], strides = [1, 1]} : vector<40x1408xf32> to vector<40x128xf32>
    %17 = arith.mulf %6, %6 : vector<40x128xf32>
    %18 = arith.mulf %7, %7 : vector<40x128xf32>
    %19 = arith.addf %17, %18 : vector<40x128xf32>
    %20 = math.sqrt %19 : vector<40x128xf32>
    %21 = arith.mulf %8, %8 : vector<40x128xf32>
    %22 = arith.mulf %9, %9 : vector<40x128xf32>
    %23 = arith.addf %21, %22 : vector<40x128xf32>
    %24 = math.sqrt %23 : vector<40x128xf32>
    %25 = arith.mulf %10, %10 : vector<40x128xf32>
    %26 = arith.mulf %11, %11 : vector<40x128xf32>
    %27 = arith.addf %25, %26 : vector<40x128xf32>
    %28 = math.sqrt %27 : vector<40x128xf32>
    %cst_5 = arith.constant 0.000000e+00 : f32
    %29 = vector.broadcast %cst_5 : f32 to vector<40x128xf32>
    %30 = arith.subf %29, %12 : vector<40x128xf32>
    %31 = math.exp %30 : vector<40x128xf32>
    %cst_6 = arith.constant 1.000000e+00 : f32
    %32 = vector.broadcast %cst_6 : f32 to vector<40x128xf32>
    %33 = arith.addf %32, %31 : vector<40x128xf32>
    %cst_7 = arith.constant 1.000000e+00 : f32
    %34 = vector.broadcast %cst_7 : f32 to vector<40x128xf32>
    %35 = arith.divf %34, %33 : vector<40x128xf32>
    %36 = arith.mulf %24, %35 : vector<40x128xf32>
    %cst_8 = arith.constant 0.000000e+00 : f32
    %37 = vector.broadcast %cst_8 : f32 to vector<40x128xf32>
    %38 = arith.subf %37, %13 : vector<40x128xf32>
    %39 = math.exp %38 : vector<40x128xf32>
    %cst_9 = arith.constant 1.000000e+00 : f32
    %40 = vector.broadcast %cst_9 : f32 to vector<40x128xf32>
    %41 = arith.addf %40, %39 : vector<40x128xf32>
    %cst_10 = arith.constant 1.000000e+00 : f32
    %42 = vector.broadcast %cst_10 : f32 to vector<40x128xf32>
    %43 = arith.divf %42, %41 : vector<40x128xf32>
    %44 = arith.mulf %20, %43 : vector<40x128xf32>
    %45 = arith.addf %36, %44 : vector<40x128xf32>
    %cst_11 = arith.constant 0.000000e+00 : f32
    %46 = vector.broadcast %cst_11 : f32 to vector<40x128xf32>
    %47 = arith.subf %46, %14 : vector<40x128xf32>
    %48 = math.exp %47 : vector<40x128xf32>
    %cst_12 = arith.constant 1.000000e+00 : f32
    %49 = vector.broadcast %cst_12 : f32 to vector<40x128xf32>
    %50 = arith.addf %49, %48 : vector<40x128xf32>
    %cst_13 = arith.constant 1.000000e+00 : f32
    %51 = vector.broadcast %cst_13 : f32 to vector<40x128xf32>
    %52 = arith.divf %51, %50 : vector<40x128xf32>
    %53 = arith.mulf %28, %52 : vector<40x128xf32>
    %54 = arith.addf %45, %53 : vector<40x128xf32>
    %55 = arith.mulf %15, %15 : vector<40x128xf32>
    %56 = arith.mulf %16, %16 : vector<40x128xf32>
    %57 = arith.addf %55, %56 : vector<40x128xf32>
    %cst_14 = arith.constant 1.000000e-10 : f32
    %58 = vector.broadcast %cst_14 : f32 to vector<40x128xf32>
    %59 = arith.maximumf %57, %58 : vector<40x128xf32>
    %60 = math.sqrt %59 : vector<40x128xf32>
    %cst_15 = arith.constant 1.000000e-10 : f32
    %61 = vector.broadcast %cst_15 : f32 to vector<40x128xf32>
    %62 = arith.addf %15, %61 : vector<40x128xf32>
    %cst_16 = arith.constant 1.000000e-10 : f32
    %63 = vector.broadcast %cst_16 : f32 to vector<40x128xf32>
    %64 = arith.addf %16, %63 : vector<40x128xf32>
    %65 = arith.mulf %62, %62 : vector<40x128xf32>
    %66 = arith.mulf %64, %64 : vector<40x128xf32>
    %67 = arith.addf %65, %66 : vector<40x128xf32>
    %cst_17 = arith.constant 1.000000e-30 : f32
    %68 = vector.broadcast %cst_17 : f32 to vector<40x128xf32>
    %69 = arith.maximumf %67, %68 : vector<40x128xf32>
    %70 = math.rsqrt %69 : vector<40x128xf32>
    %71 = arith.mulf %62, %70 : vector<40x128xf32>
    %72 = arith.mulf %64, %70 : vector<40x128xf32>
    %cst_18 = arith.constant 1.000000e-30 : f32
    %73 = vector.broadcast %cst_18 : f32 to vector<40x128xf32>
    %74 = arith.maximumf %19, %73 : vector<40x128xf32>
    %75 = math.rsqrt %74 : vector<40x128xf32>
    %76 = arith.mulf %6, %75 : vector<40x128xf32>
    %77 = arith.mulf %7, %75 : vector<40x128xf32>
    %78 = math.tanh %60 : vector<40x128xf32>
    %79 = arith.mulf %54, %78 : vector<40x128xf32>
    %80 = arith.mulf %76, %71 : vector<40x128xf32>
    %81 = arith.mulf %77, %72 : vector<40x128xf32>
    %82 = arith.subf %80, %81 : vector<40x128xf32>
    %83 = arith.mulf %79, %82 : vector<40x128xf32>
    %84 = arith.mulf %77, %71 : vector<40x128xf32>
    %85 = arith.mulf %76, %72 : vector<40x128xf32>
    %86 = arith.addf %84, %85 : vector<40x128xf32>
    %87 = arith.mulf %79, %86 : vector<40x128xf32>
    %c0_19 = arith.constant 0 : index
    %c0_20 = arith.constant 0 : index
    %88 = vector.load %arg4[%c0_19, %c0_20] : memref<128x128xf32, #tpu.memory_space<vmem>>, vector<128x128xf32>
    %cst_21 = arith.constant dense<0.000000e+00> : vector<40x128xf32>
    %89 = tpu.matmul %83, %88, %cst_21 {dimension_numbers = #tpu.dot_dimension_numbers<[1], [0], [0], [1], [0, 0, 1, 1], [], []>} : vector<40x128xf32>, vector<128x128xf32>, vector<40x128xf32> -> vector<40x128xf32>
    %c0_22 = arith.constant 0 : index
    %c0_23 = arith.constant 0 : index
    %90 = vector.load %arg5[%c0_22, %c0_23] : memref<128x128xf32, #tpu.memory_space<vmem>>, vector<128x128xf32>
    %cst_24 = arith.constant dense<0.000000e+00> : vector<40x128xf32>
    %91 = tpu.matmul %87, %90, %cst_24 {dimension_numbers = #tpu.dot_dimension_numbers<[1], [0], [0], [1], [0, 0, 1, 1], [], []>} : vector<40x128xf32>, vector<128x128xf32>, vector<40x128xf32> -> vector<40x128xf32>
    %92 = arith.addf %89, %91 : vector<40x128xf32>
    %c0_25 = arith.constant 0 : index
    %c0_26 = arith.constant 0 : index
    %93 = vector.load %arg6[%c0_25, %c0_26] : memref<40x128xf32, #tpu.memory_space<vmem>>, vector<40x128xf32>
    tpu.vector_store %arg6[%c0_25, %c0_26], %92 {strides = array<i32>} : memref<40x128xf32, #tpu.memory_space<vmem>>, vector<40x128xf32>,
    return
  }
  func.func @transform_0(%arg0: i32) -> (i32, i32) {
    %c0_i32 = arith.constant 0 : i32
    %c0_i32_0 = arith.constant 0 : i32
    return %arg0, %c0_i32 : i32, i32
  }
  func.func @transform_1(%arg0: i32) -> (i32, i32) {
    %c0_i32 = arith.constant 0 : i32
    %c0_i32_0 = arith.constant 0 : i32
    %c0_i32_1 = arith.constant 0 : i32
    return %c0_i32, %c0_i32_0 : i32, i32
  }
  func.func @transform_2(%arg0: i32) -> (i32, i32) {
    %c0_i32 = arith.constant 0 : i32
    %c0_i32_0 = arith.constant 0 : i32
    %c0_i32_1 = arith.constant 0 : i32
    return %c0_i32, %c0_i32_0 : i32, i32
  }
  func.func @transform_3(%arg0: i32) -> (i32, i32) {
    %c0_i32 = arith.constant 0 : i32
    %c0_i32_0 = arith.constant 0 : i32
    %c0_i32_1 = arith.constant 0 : i32
    return %c0_i32, %c0_i32_0 : i32, i32
  }
  func.func @transform_4(%arg0: i32) -> (i32, i32) {
    %c0_i32 = arith.constant 0 : i32
    %c0_i32_0 = arith.constant 0 : i32
    %c0_i32_1 = arith.constant 0 : i32
    return %c0_i32, %c0_i32_0 : i32, i32
  }
  func.func @transform_5(%arg0: i32) -> (i32, i32) {
    %c0_i32 = arith.constant 0 : i32
    %c0_i32_0 = arith.constant 0 : i32
    return %arg0, %c0_i32 : i32, i32
  }
}

</mosaic_0001>

<llo_original>
// kernel: _lambda_.1
$region0: #{_lambda_.1}
  #allocation0 [shape = 'u32[]', space=smem, size = 0x4, offset = 0x4, fixed_abs, tag = 'smem constant byte address 0x4 - core index']
  #allocation1 [shape = 'u32[144,128]{1,0:T(1,128)}', space=vmem, size = 0x12000, scoped, tag = 'internal scratch']
  %s0 = inlined_call_operand.vmem [shape: bf16[80,128], index: 0, kind: input, shape index: {}]
  %s1 = inlined_call_operand.vmem [shape: bf16[128,1408], index: 1, kind: input, shape index: {}]
  %s2 = inlined_call_operand.vmem [shape: f32[1,1408], index: 2, kind: input, shape index: {}]
  %s3 = inlined_call_operand.vmem [shape: f32[128,128], index: 3, kind: input, shape index: {}]
  %s4 = inlined_call_operand.vmem [shape: f32[128,128], index: 4, kind: input, shape index: {}]
  %s5 = inlined_call_operand.vmem [shape: f32[80,128], index: 5, kind: output, shape index: {}]
  %s6 = sld [smem:[#allocation0]]
  $region53: #{_lambda_.1} parent=0
    _
  %s8 = ssub.s32 1, %s6
  %s9 = scalar_select 0, %s8, %s6
  loop: start=0, step=1, limit=4
  $region2: #{_lambda_.1} parent=0 // loop_pre_header
    _
  $region3: #{_lambda_.1} parent=0 // loop_header
    %s11 = sphi 0, %s15
    %p12 = scmp.ge.s32.totalorder %s11, 4
    %s21 = sphi 0, %s23
    %s24 = sphi 0, %s21
    %s25 = sphi 0, %s24
    %s41 = sphi 0, %s25
    %s45 = sphi 0, %s45
    %s47 = sphi 0, %s45
    %s48 = sphi 0, %s47
    %s62 = sphi 0, %s48
    %s66 = sphi 0, %s66
    %s68 = sphi 0, %s66
    %s69 = sphi 0, %s68
    %s83 = sphi 0, %s69
    %s87 = sphi 0, %s87
    %s89 = sphi 0, %s87
    %s90 = sphi 0, %s89
    %s104 = sphi 0, %s90
    %s108 = sphi 0, %s108
    %s110 = sphi 0, %s108
    %s111 = sphi 0, %s110
    %s125 = sphi 0, %s111
    %s131 = sphi 0, %s133
    %s134 = sphi 0, %s131
    %s135 = sphi 0, %s134
    %s151 = sphi 0, %s135
  $region4: #{_lambda_.1} parent=0 // loop_header_branch
    %14 = sbr.rel (%p12) target = $region8
  $region5: #{_lambda_.1} parent=0 // loop_body
    %s16 = ssub.s32 %s11, 1
    %s17 = ssub.s32 %s11, 2
    %s18 = sadd.s32 %s11, 1
    %s19 = ssub.s32 %s11, %s18
    %p20 = scmp.eq.s32.totalorder %s19, 0
    %s22 = sadd.s32 %s21, 1
    %s23 = scalar_select %p20, %s21, %s22
    %p26 = pneg %p20
    %p27 = scmp.eq.s32.totalorder %s11, 1
    %p28 = por %p26, %p27
    %p29 = scmp.ne.s32.totalorder %s21, %s24
    %p30 = scmp.eq.s32.totalorder %s11, 0
    %p31 = por %p29, %p30
    %p32 = scmp.ne.s32.totalorder %s21, %s24
    %p33 = scmp.eq.s32.totalorder %s16, 1
    %p34 = por %p32, %p33
    %p35 = scmp.ne.s32.totalorder %s24, %s25
    %p36 = scmp.eq.s32.totalorder %s16, 0
    %p37 = por %p35, %p36
    %p38 = scmp.ne.s32.totalorder %s24, %s25
    %p39 = scmp.eq.s32.totalorder %s17, 1
    %p40 = por %p38, %p39
    %p42 = scmp.ne.s32.totalorder %s25, %s41
    %p43 = scmp.eq.s32.totalorder %s17, 0
    %p44 = por %p42, %p43
    %s46 = sadd.s32 %s45, 1
    %p49 = scmp.eq.s32.totalorder %s11, 1
    %p50 = scmp.ne.s32.totalorder %s45, %s47
    %p51 = scmp.eq.s32.totalorder %s11, 0
    %p52 = por %p50, %p51
    %p53 = scmp.ne.s32.totalorder %s45, %s47
    %p54 = scmp.eq.s32.totalorder %s16, 1
    %p55 = por %p53, %p54
    %p56 = scmp.ne.s32.totalorder %s47, %s48
    %p57 = scmp.eq.s32.totalorder %s16, 0
    %p58 = por %p56, %p57
    %p59 = scmp.ne.s32.totalorder %s47, %s48
    %p60 = scmp.eq.s32.totalorder %s17, 1
    %p61 = por %p59, %p60
    %p63 = scmp.ne.s32.totalorder %s48, %s62
    %p64 = scmp.eq.s32.totalorder %s17, 0
    %p65 = por %p63, %p64
    %s67 = sadd.s32 %s66, 1
    %p70 = scmp.eq.s32.totalorder %s11, 1
    %p71 = scmp.ne.s32.totalorder %s66, %s68
    %p72 = scmp.eq.s32.totalorder %s11, 0
    %p73 = por %p71, %p72
    %p74 = scmp.ne.s32.totalorder %s66, %s68
    %p75 = scmp.eq.s32.totalorder %s16, 1
    %p76 = por %p74, %p75
    %p77 = scmp.ne.s32.totalorder %s68, %s69
    %p78 = scmp.eq.s32.totalorder %s16, 0
    %p79 = por %p77, %p78
    %p80 = scmp.ne.s32.totalorder %s68, %s69
    %p81 = scmp.eq.s32.totalorder %s17, 1
    %p82 = por %p80, %p81
    %p84 = scmp.ne.s32.totalorder %s69, %s83
    %p85 = scmp.eq.s32.totalorder %s17, 0
    %p86 = por %p84, %p85
    %s88 = sadd.s32 %s87, 1
    %p91 = scmp.eq.s32.totalorder %s11, 1
    %p92 = scmp.ne.s32.totalorder %s87, %s89
    %p93 = scmp.eq.s32.totalorder %s11, 0
    %p94 = por %p92, %p93
    %p95 = scmp.ne.s32.totalorder %s87, %s89
    %p96 = scmp.eq.s32.totalorder %s16, 1
    %p97 = por %p95, %p96
    %p98 = scmp.ne.s32.totalorder %s89, %s90
    %p99 = scmp.eq.s32.totalorder %s16, 0
    %p100 = por %p98, %p99
    %p101 = scmp.ne.s32.totalorder %s89, %s90
    %p102 = scmp.eq.s32.totalorder %s17, 1
    %p103 = por %p101, %p102
    %p105 = scmp.ne.s32.totalorder %s90, %s104
    %p106 = scmp.eq.s32.totalorder %s17, 0
    %p107 = por %p105, %p106
    %s109 = sadd.s32 %s108, 1
    %p112 = scmp.eq.s32.totalorder %s11, 1
    %p113 = scmp.ne.s32.totalorder %s108, %s110
    %p114 = scmp.eq.s32.totalorder %s11, 0
    %p115 = por %p113, %p114
    %p116 = scmp.ne.s32.totalorder %s108, %s110
    %p117 = scmp.eq.s32.totalorder %s16, 1
    %p118 = por %p116, %p117
    %p119 = scmp.ne.s32.totalorder %s110, %s111
    %p120 = scmp.eq.s32.totalorder %s16, 0
    %p121 = por %p119, %p120
    %p122 = scmp.ne.s32.totalorder %s110, %s111
    %p123 = scmp.eq.s32.totalorder %s17, 1
    %p124 = por %p122, %p123
    %p126 = scmp.ne.s32.totalorder %s111, %s125
    %p127 = scmp.eq.s32.totalorder %s17, 0
    %p128 = por %p126, %p127
    %s129 = ssub.s32 %s11, %s18
    %p130 = scmp.eq.s32.totalorder %s129, 0
    %s132 = sadd.s32 %s131, 1
    %s133 = scalar_select %p130, %s131, %s132
    %p136 = pneg %p130
    %p137 = scmp.eq.s32.totalorder %s11, 1
    %p138 = por %p136, %p137
    %p139 = scmp.ne.s32.totalorder %s131, %s134
    %p140 = scmp.eq.s32.totalorder %s11, 0
    %p141 = por %p139, %p140
    %p142 = scmp.ne.s32.totalorder %s131, %s134
    %p143 = scmp.eq.s32.totalorder %s16, 1
    %p144 = por %p142, %p143
    %p145 = scmp.ne.s32.totalorder %s134, %s135
    %p146 = scmp.eq.s32.totalorder %s16, 0
    %p147 = por %p145, %p146
    %p148 = scmp.ne.s32.totalorder %s134, %s135
    %p149 = scmp.eq.s32.totalorder %s17, 1
    %p150 = por %p148, %p149
    %p152 = scmp.ne.s32.totalorder %s135, %s151
    %p153 = scmp.eq.s32.totalorder %s17, 0
    %p154 = por %p152, %p153
    %p155 = scmp.le.s32.totalorder 1, %s11
    %p156 = scmp.lt.s32.totalorder %s11, 3
    %p157 = pnand %p155, %p156
    %p158 = pneg %p157
    // Predicated region
    $region9: #{_lambda_.1} parent=5 // pred_check
      _
    $region10: #{_lambda_.1} parent=5 // pred_check_branch
      %160 = sbr.rel (%p157) target = $region12
    $region11: #{_lambda_.1} parent=5 // pred_region
      %s161 = ssub.s32 %s11, 1
      // Predicated region
      $region13: #{_lambda_.1} parent=11 // pred_check
        %p162 = pneg %p58
      $region14: #{_lambda_.1} parent=11 // pred_check_branch
        %164 = sbr.rel (%p162) target = $region16
      $region15: #{_lambda_.1} parent=11 // pred_region
        _
      $region16: #{_lambda_.1} parent=11 // pred_fallthru
        _
      // Predicated region
      $region17: #{_lambda_.1} parent=11 // pred_check
        %p165 = pneg %p79
      $region18: #{_lambda_.1} parent=11 // pred_check_branch
        %167 = sbr.rel (%p165) target = $region20
      $region19: #{_lambda_.1} parent=11 // pred_region
        _
      $region20: #{_lambda_.1} parent=11 // pred_fallthru
        _
      // Predicated region
      $region21: #{_lambda_.1} parent=11 // pred_check
        %p168 = pneg %p100
      $region22: #{_lambda_.1} parent=11 // pred_check_branch
        %170 = sbr.rel (%p168) target = $region24
      $region23: #{_lambda_.1} parent=11 // pred_region
        _
      $region24: #{_lambda_.1} parent=11 // pred_fallthru
        _
      // Predicated region
      $region25: #{_lambda_.1} parent=11 // pred_check
        %p171 = pneg %p121
      $region26: #{_lambda_.1} parent=11 // pred_check_branch
        %173 = sbr.rel (%p171) target = $region28
      $region27: #{_lambda_.1} parent=11 // pred_region
        _
      $region28: #{_lambda_.1} parent=11 // pred_fallthru
        _
    $region12: #{_lambda_.1} parent=5 // pred_fallthru
      _
    %p174 = scmp.lt.s32.totalorder %s11, 2
    // Predicated region
    $region29: #{_lambda_.1} parent=5 // pred_check
      %p175 = pneg %p174
    $region30: #{_lambda_.1} parent=5 // pred_check_branch
      %177 = sbr.rel (%p175) target = $region32
    $region31: #{_lambda_.1} parent=5 // pred_region
      // Predicated region
      $region33: #{_lambda_.1} parent=31 // pred_check
        %p178 = pneg %p31
      $region34: #{_lambda_.1} parent=31 // pred_check_branch
        %180 = sbr.rel (%p178) target = $region36
      $region35: #{_lambda_.1} parent=31 // pred_region
        %s181 = smul.u32 5, %s11
        %p182 = scmp.lt.s32.totalorder %s181, 9
        %s183 = scalar_select %p182, %s181, 9
        %s184 = smul.addr %s183, 4
        %s185 = scalar_lea.vmem %s0, %s184
        %s186 = smul.u32 5, %s11
      $region36: #{_lambda_.1} parent=31 // pred_fallthru
        _
    $region32: #{_lambda_.1} parent=5 // pred_fallthru
      _
    %p187 = scmp.le.s32.totalorder 1, %s11
    %p188 = scmp.lt.s32.totalorder %s11, 3
    %p189 = pnand %p187, %p188
    %p190 = pneg %p189
    // Predicated region
    $region37: #{_lambda_.1} parent=5 // pred_check
      _
    $region38: #{_lambda_.1} parent=5 // pred_check_branch
      %192 = sbr.rel (%p189) target = $region40
    $region39: #{_lambda_.1} parent=5 // pred_region
      %s193 = ssub.s32 %s11, 1
      %s194 = smul.u32 5, %s16
      %p195 = scmp.lt.s32.totalorder %s194, 9
      %s196 = scalar_select %p195, %s194, 9
      %s197 = smul.addr %s196, 4
      %s198 = scalar_lea.vmem %s0, %s197
      %p199 = pneg %p37
      %p200 = pneg %p34
      %p201 = pneg %p58
      %p202 = pneg %p55
      %p203 = pneg %p79
      %p204 = pneg %p76
      %p205 = pneg %p100
      %p206 = pneg %p97
      %p207 = pneg %p121
      %p208 = pneg %p118
      %p209 = pneg %p147
      %p210 = pneg %p144
      %s211 = smul.u32 5, %s16
      %p212 = scmp.lt.s32.totalorder %s211, 9
      %s213 = scalar_select %p212, %s211, 9
      %s214 = smul.addr %s213, 8
      %s215 = scalar_lea.vmem %s5, %s214
      %s216 = smul.u32 5, %s16
      %p217 = scmp.lt.s32.totalorder %s216, 9
      %s218 = scalar_select %p217, %s216, 9
      %s219 = smul.addr %s218, 4
      %s220 = scalar_lea.vmem %s0, %s219
      %s221 = smul.u32 5, %s16
      %s222 = smul.u32 5, %s16
      %p223 = scmp.lt.s32.totalorder %s222, 9
      %s224 = scalar_select %p223, %s222, 9
      %s225 = smul.addr %s224, 8
      %s226 = scalar_lea.vmem %s5, %s225
      %s227 = smul.u32 5, %s16
      %v229 = vld [vmem:[%s220] sm:$0xf]
      %v230 = vld [vmem:[%s220 + $0x4] sm:$0xf]
      %v231 = vld [vmem:[%s220 + $0x8] sm:$0xf]
      %v232 = vld [vmem:[%s220 + $0xc] sm:$0xf]
      %v233 = vld [vmem:[%s220 + $0x10] sm:$0xf]
      %v234 = vld [vmem:[%s1] sm:$0xff]
      %v235 = vld [vmem:[%s1 + $0x8] sm:$0xff]
      %v236 = vld [vmem:[%s1 + $0x10] sm:$0xff]
      %v237 = vld [vmem:[%s1 + $0x18] sm:$0xff]
      %v238 = vld [vmem:[%s1 + $0x20] sm:$0xff]
      %v239 = vld [vmem:[%s1 + $0x28] sm:$0xf]
      %v240 = vld [vmem:[%s1 + $0x2c] sm:$0xff]
      %v241 = vld [vmem:[%s1 + $0x34] sm:$0xff]
      %v242 = vld [vmem:[%s1 + $0x3c] sm:$0xff]
      %v243 = vld [vmem:[%s1 + $0x44] sm:$0xff]
      %v244 = vld [vmem:[%s1 + $0x4c] sm:$0xff]
      %v245 = vld [vmem:[%s1 + $0x54] sm:$0xf]
      %v246 = vld [vmem:[%s1 + $0x58] sm:$0xff]
      %v247 = vld [vmem:[%s1 + $0x60] sm:$0xff]
      %v248 = vld [vmem:[%s1 + $0x68] sm:$0xff]
      %v249 = vld [vmem:[%s1 + $0x70] sm:$0xff]
      %v250 = vld [vmem:[%s1 + $0x78] sm:$0xff]
      %v251 = vld [vmem:[%s1 + $0x80] sm:$0xf]
      %v252 = vld [vmem:[%s1 + $0x84] sm:$0xff]
      %v253 = vld [vmem:[%s1 + $0x8c] sm:$0xff]
      %v254 = vld [vmem:[%s1 + $0x94] sm:$0xff]
      %v255 = vld [vmem:[%s1 + $0x9c] sm:$0xff]
      %v256 = vld [vmem:[%s1 + $0xa4] sm:$0xff]
      %v257 = vld [vmem:[%s1 + $0xac] sm:$0xf]
      %v258 = vld [vmem:[%s1 + $0xb0] sm:$0xff]
      %v259 = vld [vmem:[%s1 + $0xb8] sm:$0xff]
      %v260 = vld [vmem:[%s1 + $0xc0] sm:$0xff]
      %v261 = vld [vmem:[%s1 + $0xc8] sm:$0xff]
      %v262 = vld [vmem:[%s1 + $0xd0] sm:$0xff]
      %v263 = vld [vmem:[%s1 + $0xd8] sm:$0xf]
      %v264 = vld [vmem:[%s1 + $0xdc] sm:$0xff]
      %v265 = vld [vmem:[%s1 + $0xe4] sm:$0xff]
      %v266 = vld [vmem:[%s1 + $0xec] sm:$0xff]
      %v267 = vld [vmem:[%s1 + $0xf4] sm:$0xff]
      %v268 = vld [vmem:[%s1 + $0xfc] sm:$0xff]
      %v269 = vld [vmem:[%s1 + $0x104] sm:$0xf]
      %v270 = vld [vmem:[%s1 + $0x108] sm:$0xff]
      %v271 = vld [vmem:[%s1 + $0x110] sm:$0xff]
      %v272 = vld [vmem:[%s1 + $0x118] sm:$0xff]
      %v273 = vld [vmem:[%s1 + $0x120] sm:$0xff]
      %v274 = vld [vmem:[%s1 + $0x128] sm:$0xff]
      %v275 = vld [vmem:[%s1 + $0x130] sm:$0xf]
      %v276 = vld [vmem:[%s1 + $0x134] sm:$0xff]
      %v277 = vld [vmem:[%s1 + $0x13c] sm:$0xff]
      %v278 = vld [vmem:[%s1 + $0x144] sm:$0xff]
      %v279 = vld [vmem:[%s1 + $0x14c] sm:$0xff]
      %v280 = vld [vmem:[%s1 + $0x154] sm:$0xff]
      %v281 = vld [vmem:[%s1 + $0x15c] sm:$0xf]
      %v282 = vld [vmem:[%s1 + $0x160] sm:$0xff]
      %v283 = vld [vmem:[%s1 + $0x168] sm:$0xff]
      %v284 = vld [vmem:[%s1 + $0x170] sm:$0xff]
      %v285 = vld [vmem:[%s1 + $0x178] sm:$0xff]
      %v286 = vld [vmem:[%s1 + $0x180] sm:$0xff]
      %v287 = vld [vmem:[%s1 + $0x188] sm:$0xf]
      %v288 = vld [vmem:[%s1 + $0x18c] sm:$0xff]
      %v289 = vld [vmem:[%s1 + $0x194] sm:$0xff]
      %v290 = vld [vmem:[%s1 + $0x19c] sm:$0xff]
      %v291 = vld [vmem:[%s1 + $0x1a4] sm:$0xff]
      %v292 = vld [vmem:[%s1 + $0x1ac] sm:$0xff]
      %v293 = vld [vmem:[%s1 + $0x1b4] sm:$0xf]
      %v294 = vld [vmem:[%s1 + $0x1b8] sm:$0xff]
      %v295 = vld [vmem:[%s1 + $0x1c0] sm:$0xff]
      %v296 = vld [vmem:[%s1 + $0x1c8] sm:$0xff]
      %v297 = vld [vmem:[%s1 + $0x1d0] sm:$0xff]
      %v298 = vld [vmem:[%s1 + $0x1d8] sm:$0xff]
      %v299 = vld [vmem:[%s1 + $0x1e0] sm:$0xf]
      %v300 = vld [vmem:[%s1 + $0x1e4] sm:$0xff]
      %v301 = vld [vmem:[%s1 + $0x1ec] sm:$0xff]
      %v302 = vld [vmem:[%s1 + $0x1f4] sm:$0xff]
      %v303 = vld [vmem:[%s1 + $0x1fc] sm:$0xff]
      %v304 = vld [vmem:[%s1 + $0x204] sm:$0xff]
      %v305 = vld [vmem:[%s1 + $0x20c] sm:$0xf]
      %v306 = vld [vmem:[%s1 + $0x210] sm:$0xff]
      %v307 = vld [vmem:[%s1 + $0x218] sm:$0xff]
      %v308 = vld [vmem:[%s1 + $0x220] sm:$0xff]
      %v309 = vld [vmem:[%s1 + $0x228] sm:$0xff]
      %v310 = vld [vmem:[%s1 + $0x230] sm:$0xff]
      %v311 = vld [vmem:[%s1 + $0x238] sm:$0xf]
      %v312 = vld [vmem:[%s1 + $0x23c] sm:$0xff]
      %v313 = vld [vmem:[%s1 + $0x244] sm:$0xff]
      %v314 = vld [vmem:[%s1 + $0x24c] sm:$0xff]
      %v315 = vld [vmem:[%s1 + $0x254] sm:$0xff]
      %v316 = vld [vmem:[%s1 + $0x25c] sm:$0xff]
      %v317 = vld [vmem:[%s1 + $0x264] sm:$0xf]
      %v318 = vld [vmem:[%s1 + $0x268] sm:$0xff]
      %v319 = vld [vmem:[%s1 + $0x270] sm:$0xff]
      %v320 = vld [vmem:[%s1 + $0x278] sm:$0xff]
      %v321 = vld [vmem:[%s1 + $0x280] sm:$0xff]
      %v322 = vld [vmem:[%s1 + $0x288] sm:$0xff]
      %v323 = vld [vmem:[%s1 + $0x290] sm:$0xf]
      %v324 = vld [vmem:[%s1 + $0x294] sm:$0xff]
      %v325 = vld [vmem:[%s1 + $0x29c] sm:$0xff]
      %v326 = vld [vmem:[%s1 + $0x2a4] sm:$0xff]
      %v327 = vld [vmem:[%s1 + $0x2ac] sm:$0xff]
      %v328 = vld [vmem:[%s1 + $0x2b4] sm:$0xff]
      %v329 = vld [vmem:[%s1 + $0x2bc] sm:$0xf]
      %v330 = vld [vmem:[%s2] sm:$0xff]
      %v331 = vld [vmem:[%s2 + $0x8] sm:$0x7]
      %v334 = vlaneseq
      %v335 = vshrl.u32 %v334, 7
      %v336 = vsub.s32 0, %v335
      %v337 = vrot.slane %v330, %v336
      %v338 = vlaneseq
      %v339 = vshrl.u32 %v338, 7
      %v340 = vsub.s32 1, %v339
      %v341 = vrot.slane %v330, %v340
      %v342 = vlaneseq
      %v343 = vshrl.u32 %v342, 7
      %v344 = vsub.s32 2, %v343
      %v345 = vrot.slane %v330, %v344
      %v346 = vlaneseq
      %v347 = vshrl.u32 %v346, 7
      %v348 = vsub.s32 3, %v347
      %v349 = vrot.slane %v330, %v348
      %v350 = vlaneseq
      %v351 = vshrl.u32 %v350, 7
      %v352 = vsub.s32 4, %v351
      %v353 = vrot.slane %v330, %v352
      %v354 = vlaneseq
      %v355 = vshrl.u32 %v354, 7
      %v356 = vsub.s32 5, %v355
      %v357 = vrot.slane %v330, %v356
      %v358 = vlaneseq
      %v359 = vshrl.u32 %v358, 7
      %v360 = vsub.s32 6, %v359
      %v361 = vrot.slane %v330, %v360
      %v362 = vlaneseq
      %v363 = vshrl.u32 %v362, 7
      %v364 = vsub.s32 7, %v363
      %v365 = vrot.slane %v330, %v364
      %v366 = vlaneseq
      %v367 = vshrl.u32 %v366, 7
      %v368 = vsub.s32 0, %v367
      %v369 = vrot.slane %v331, %v368
      %v370 = vlaneseq
      %v371 = vshrl.u32 %v370, 7
      %v372 = vsub.s32 1, %v371
      %v373 = vrot.slane %v331, %v372
      %v374 = vlaneseq
      %v375 = vshrl.u32 %v374, 7
      %v376 = vsub.s32 2, %v375
      %v377 = vrot.slane %v331, %v376
      %v394 = vunpack.c.l.b16 %v229
      %v395 = vunpack.c.l.b16 %v230
      %v396 = vunpack.c.l.b16 %v231
      %v397 = vunpack.c.l.b16 %v232
      %v398 = vunpack.c.l.b16 %v233
      %v399 = vpack.c.b16 %v395, %v394
      %v400 = vpack.c.b16 %v397, %v396
      %v401 = vpack.c.b16 %v398, %v398
      %v501 = vunpack.c.l.b16 %v234
      %v502 = vunpack.c.h.b16 %v234
      %v503 = vunpack.c.l.b16 %v235
      %v504 = vunpack.c.h.b16 %v235
      %v505 = vunpack.c.l.b16 %v236
      %v506 = vunpack.c.h.b16 %v236
      %v507 = vunpack.c.l.b16 %v237
      %v508 = vunpack.c.h.b16 %v237
      %v509 = vunpack.c.l.b16 %v238
      %v510 = vunpack.c.h.b16 %v238
      %v511 = vunpack.c.l.b16 %v239
      %v512 = vunpack.c.l.b16 %v240
      %v513 = vunpack.c.h.b16 %v240
      %v514 = vunpack.c.l.b16 %v241
      %v515 = vunpack.c.h.b16 %v241
      %v516 = vunpack.c.l.b16 %v242
      %v517 = vunpack.c.h.b16 %v242
      %v518 = vunpack.c.l.b16 %v243
      %v519 = vunpack.c.h.b16 %v243
      %v520 = vunpack.c.l.b16 %v244
      %v521 = vunpack.c.h.b16 %v244
      %v522 = vunpack.c.l.b16 %v245
      %v523 = vunpack.c.l.b16 %v246
      %v524 = vunpack.c.h.b16 %v246
      %v525 = vunpack.c.l.b16 %v247
      %v526 = vunpack.c.h.b16 %v247
      %v527 = vunpack.c.l.b16 %v248
      %v528 = vunpack.c.h.b16 %v248
      %v529 = vunpack.c.l.b16 %v249
      %v530 = vunpack.c.h.b16 %v249
      %v531 = vunpack.c.l.b16 %v250
      %v532 = vunpack.c.h.b16 %v250
      %v533 = vunpack.c.l.b16 %v251
      %v534 = vunpack.c.l.b16 %v252
      %v535 = vunpack.c.h.b16 %v252
      %v536 = vunpack.c.l.b16 %v253
      %v537 = vunpack.c.h.b16 %v253
      %v538 = vunpack.c.l.b16 %v254
      %v539 = vunpack.c.h.b16 %v254
      %v540 = vunpack.c.l.b16 %v255
      %v541 = vunpack.c.h.b16 %v255
      %v542 = vunpack.c.l.b16 %v256
      %v543 = vunpack.c.h.b16 %v256
      %v544 = vunpack.c.l.b16 %v257
      %v545 = vunpack.c.l.b16 %v258
      %v546 = vunpack.c.h.b16 %v258
      %v547 = vunpack.c.l.b16 %v259
      %v548 = vunpack.c.h.b16 %v259
      %v549 = vunpack.c.l.b16 %v260
      %v550 = vunpack.c.h.b16 %v260
      %v551 = vunpack.c.l.b16 %v261
      %v552 = vunpack.c.h.b16 %v261
      %v553 = vunpack.c.l.b16 %v262
      %v554 = vunpack.c.h.b16 %v262
      %v555 = vunpack.c.l.b16 %v263
      %v556 = vunpack.c.l.b16 %v264
      %v557 = vunpack.c.h.b16 %v264
      %v558 = vunpack.c.l.b16 %v265
      %v559 = vunpack.c.h.b16 %v265
      %v560 = vunpack.c.l.b16 %v266
      %v561 = vunpack.c.h.b16 %v266
      %v562 = vunpack.c.l.b16 %v267
      %v563 = vunpack.c.h.b16 %v267
      %v564 = vunpack.c.l.b16 %v268
      %v565 = vunpack.c.h.b16 %v268
      %v566 = vunpack.c.l.b16 %v269
      %v567 = vunpack.c.l.b16 %v270
      %v568 = vunpack.c.h.b16 %v270
      %v569 = vunpack.c.l.b16 %v271
      %v570 = vunpack.c.h.b16 %v271
      %v571 = vunpack.c.l.b16 %v272
      %v572 = vunpack.c.h.b16 %v272
      %v573 = vunpack.c.l.b16 %v273
      %v574 = vunpack.c.h.b16 %v273
      %v575 = vunpack.c.l.b16 %v274
      %v576 = vunpack.c.h.b16 %v274
      %v577 = vunpack.c.l.b16 %v275
      %v578 = vunpack.c.l.b16 %v276
      %v579 = vunpack.c.h.b16 %v276
      %v580 = vunpack.c.l.b16 %v277
      %v581 = vunpack.c.h.b16 %v277
      %v582 = vunpack.c.l.b16 %v278
      %v583 = vunpack.c.h.b16 %v278
      %v584 = vunpack.c.l.b16 %v279
      %v585 = vunpack.c.h.b16 %v279
      %v586 = vunpack.c.l.b16 %v280
      %v587 = vunpack.c.h.b16 %v280
      %v588 = vunpack.c.l.b16 %v281
      %v589 = vunpack.c.l.b16 %v282
      %v590 = vunpack.c.h.b16 %v282
      %v591 = vunpack.c.l.b16 %v283
      %v592 = vunpack.c.h.b16 %v283
      %v593 = vunpack.c.l.b16 %v284
      %v594 = vunpack.c.h.b16 %v284
      %v595 = vunpack.c.l.b16 %v285
      %v596 = vunpack.c.h.b16 %v285
      %v597 = vunpack.c.l.b16 %v286
      %v598 = vunpack.c.h.b16 %v286
      %v599 = vunpack.c.l.b16 %v287
      %v600 = vunpack.c.l.b16 %v288
      %v601 = vunpack.c.h.b16 %v288
      %v602 = vunpack.c.l.b16 %v289
      %v603 = vunpack.c.h.b16 %v289
      %v604 = vunpack.c.l.b16 %v290
      %v605 = vunpack.c.h.b16 %v290
      %v606 = vunpack.c.l.b16 %v291
      %v607 = vunpack.c.h.b16 %v291
      %v608 = vunpack.c.l.b16 %v292
      %v609 = vunpack.c.h.b16 %v292
      %v610 = vunpack.c.l.b16 %v293
      %v611 = vunpack.c.l.b16 %v294
      %v612 = vunpack.c.h.b16 %v294
      %v613 = vunpack.c.l.b16 %v295
      %v614 = vunpack.c.h.b16 %v295
      %v615 = vunpack.c.l.b16 %v296
      %v616 = vunpack.c.h.b16 %v296
      %v617 = vunpack.c.l.b16 %v297
      %v618 = vunpack.c.h.b16 %v297
      %v619 = vunpack.c.l.b16 %v298
      %v620 = vunpack.c.h.b16 %v298
      %v621 = vunpack.c.l.b16 %v299
      %v622 = vunpack.c.l.b16 %v300
      %v623 = vunpack.c.h.b16 %v300
      %v624 = vunpack.c.l.b16 %v301
      %v625 = vunpack.c.h.b16 %v301
      %v626 = vunpack.c.l.b16 %v302
      %v627 = vunpack.c.h.b16 %v302
      %v628 = vunpack.c.l.b16 %v303
      %v629 = vunpack.c.h.b16 %v303
      %v630 = vunpack.c.l.b16 %v304
      %v631 = vunpack.c.h.b16 %v304
      %v632 = vunpack.c.l.b16 %v305
      %v633 = vunpack.c.l.b16 %v306
      %v634 = vunpack.c.h.b16 %v306
      %v635 = vunpack.c.l.b16 %v307
      %v636 = vunpack.c.h.b16 %v307
      %v637 = vunpack.c.l.b16 %v308
      %v638 = vunpack.c.h.b16 %v308
      %v639 = vunpack.c.l.b16 %v309
      %v640 = vunpack.c.h.b16 %v309
      %v641 = vunpack.c.l.b16 %v310
      %v642 = vunpack.c.h.b16 %v310
      %v643 = vunpack.c.l.b16 %v311
      %v644 = vunpack.c.l.b16 %v312
      %v645 = vunpack.c.h.b16 %v312
      %v646 = vunpack.c.l.b16 %v313
      %v647 = vunpack.c.h.b16 %v313
      %v648 = vunpack.c.l.b16 %v314
      %v649 = vunpack.c.h.b16 %v314
      %v650 = vunpack.c.l.b16 %v315
      %v651 = vunpack.c.h.b16 %v315
      %v652 = vunpack.c.l.b16 %v316
      %v653 = vunpack.c.h.b16 %v316
      %v654 = vunpack.c.l.b16 %v317
      %v655 = vunpack.c.l.b16 %v318
      %v656 = vunpack.c.h.b16 %v318
      %v657 = vunpack.c.l.b16 %v319
      %v658 = vunpack.c.h.b16 %v319
      %v659 = vunpack.c.l.b16 %v320
      %v660 = vunpack.c.h.b16 %v320
      %v661 = vunpack.c.l.b16 %v321
      %v662 = vunpack.c.h.b16 %v321
      %v663 = vunpack.c.l.b16 %v322
      %v664 = vunpack.c.h.b16 %v322
      %v665 = vunpack.c.l.b16 %v323
      %v666 = vunpack.c.l.b16 %v324
      %v667 = vunpack.c.h.b16 %v324
      %v668 = vunpack.c.l.b16 %v325
      %v669 = vunpack.c.h.b16 %v325
      %v670 = vunpack.c.l.b16 %v326
      %v671 = vunpack.c.h.b16 %v326
      %v672 = vunpack.c.l.b16 %v327
      %v673 = vunpack.c.h.b16 %v327
      %v674 = vunpack.c.l.b16 %v328
      %v675 = vunpack.c.h.b16 %v328
      %v676 = vunpack.c.l.b16 %v329
      %v677 = vpack.c.b16 %v512, %v501
      %v678 = vpack.c.b16 %v513, %v502
      %v679 = vpack.c.b16 %v514, %v503
      %v680 = vpack.c.b16 %v515, %v504
      %v681 = vpack.c.b16 %v516, %v505
      %v682 = vpack.c.b16 %v517, %v506
      %v683 = vpack.c.b16 %v518, %v507
      %v684 = vpack.c.b16 %v519, %v508
      %v685 = vpack.c.b16 %v520, %v509
      %v686 = vpack.c.b16 %v521, %v510
      %v687 = vpack.c.b16 %v522, %v511
      %v688 = vpack.c.b16 %v534, %v523
      %v689 = vpack.c.b16 %v535, %v524
      %v690 = vpack.c.b16 %v536, %v525
      %v691 = vpack.c.b16 %v537, %v526
      %v692 = vpack.c.b16 %v538, %v527
      %v693 = vpack.c.b16 %v539, %v528
      %v694 = vpack.c.b16 %v540, %v529
      %v695 = vpack.c.b16 %v541, %v530
      %v696 = vpack.c.b16 %v542, %v531
      %v697 = vpack.c.b16 %v543, %v532
      %v698 = vpack.c.b16 %v544, %v533
      %v699 = vpack.c.b16 %v556, %v545
      %v700 = vpack.c.b16 %v557, %v546
      %v701 = vpack.c.b16 %v558, %v547
      %v702 = vpack.c.b16 %v559, %v548
      %v703 = vpack.c.b16 %v560, %v549
      %v704 = vpack.c.b16 %v561, %v550
      %v705 = vpack.c.b16 %v562, %v551
      %v706 = vpack.c.b16 %v563, %v552
      %v707 = vpack.c.b16 %v564, %v553
      %v708 = vpack.c.b16 %v565, %v554
      %v709 = vpack.c.b16 %v566, %v555
      %v710 = vpack.c.b16 %v578, %v567
      %v711 = vpack.c.b16 %v579, %v568
      %v712 = vpack.c.b16 %v580, %v569
      %v713 = vpack.c.b16 %v581, %v570
      %v714 = vpack.c.b16 %v582, %v571
      %v715 = vpack.c.b16 %v583, %v572
      %v716 = vpack.c.b16 %v584, %v573
      %v717 = vpack.c.b16 %v585, %v574
      %v718 = vpack.c.b16 %v586, %v575
      %v719 = vpack.c.b16 %v587, %v576
      %v720 = vpack.c.b16 %v588, %v577
      %v721 = vpack.c.b16 %v600, %v589
      %v722 = vpack.c.b16 %v601, %v590
      %v723 = vpack.c.b16 %v602, %v591
      %v724 = vpack.c.b16 %v603, %v592
      %v725 = vpack.c.b16 %v604, %v593
      %v726 = vpack.c.b16 %v605, %v594
      %v727 = vpack.c.b16 %v606, %v595
      %v728 = vpack.c.b16 %v607, %v596
      %v729 = vpack.c.b16 %v608, %v597
      %v730 = vpack.c.b16 %v609, %v598
      %v731 = vpack.c.b16 %v610, %v599
      %v732 = vpack.c.b16 %v622, %v611
      %v733 = vpack.c.b16 %v623, %v612
      %v734 = vpack.c.b16 %v624, %v613
      %v735 = vpack.c.b16 %v625, %v614
      %v736 = vpack.c.b16 %v626, %v615
      %v737 = vpack.c.b16 %v627, %v616
      %v738 = vpack.c.b16 %v628, %v617
      %v739 = vpack.c.b16 %v629, %v618
      %v740 = vpack.c.b16 %v630, %v619
      %v741 = vpack.c.b16 %v631, %v620
      %v742 = vpack.c.b16 %v632, %v621
      %v743 = vpack.c.b16 %v644, %v633
      %v744 = vpack.c.b16 %v645, %v634
      %v745 = vpack.c.b16 %v646, %v635
      %v746 = vpack.c.b16 %v647, %v636
      %v747 = vpack.c.b16 %v648, %v637
      %v748 = vpack.c.b16 %v649, %v638
      %v749 = vpack.c.b16 %v650, %v639
      %v750 = vpack.c.b16 %v651, %v640
      %v751 = vpack.c.b16 %v652, %v641
      %v752 = vpack.c.b16 %v653, %v642
      %v753 = vpack.c.b16 %v654, %v643
      %v754 = vpack.c.b16 %v666, %v655
      %v755 = vpack.c.b16 %v667, %v656
      %v756 = vpack.c.b16 %v668, %v657
      %v757 = vpack.c.b16 %v669, %v658
      %v758 = vpack.c.b16 %v670, %v659
      %v759 = vpack.c.b16 %v671, %v660
      %v760 = vpack.c.b16 %v672, %v661
      %v761 = vpack.c.b16 %v673, %v662
      %v762 = vpack.c.b16 %v674, %v663
      %v763 = vpack.c.b16 %v675, %v664
      %v764 = vpack.c.b16 %v676, %v665
      %853 = vmatprep.subr.bf16.mxu0 %v678
      %854 = vmatpush1.bf16.msra.mxu0 %v677
      %855 = vmatprep.subr.bf16.mxu0 %v689
      %856 = vmatpush1.bf16.msra.mxu0 %v688
      %857 = vmatprep.subr.bf16.mxu0 %v700
      %858 = vmatpush1.bf16.msra.mxu0 %v699
      %859 = vmatprep.subr.bf16.mxu0 %v711
      %860 = vmatpush1.bf16.msra.mxu0 %v710
      %861 = vmatprep.subr.bf16.mxu0 %v722
      %862 = vmatpush1.bf16.msra.mxu0 %v721
      %863 = vmatprep.subr.bf16.mxu0 %v733
      %864 = vmatpush1.bf16.msra.mxu0 %v732
      %865 = vmatprep.subr.bf16.mxu0 %v744
      %866 = vmatpush1.bf16.msra.mxu0 %v743
      %867 = vmatprep.subr.bf16.mxu0 %v755
      %868 = vmatpush1.bf16.msra.mxu0 %v754
      %869 = vmatprep.subr.bf16.mxu0 0
      %870 = vmatpush1.bf16.msra.mxu0 0
      %871 = vmatprep.subr.bf16.mxu0 0
      %872 = vmatpush1.bf16.msra.mxu0 0
      %873 = vmatprep.subr.bf16.mxu0 0
      %874 = vmatpush1.bf16.msra.mxu0 0
      %875 = vmatprep.subr.bf16.mxu0 0
      %876 = vmatpush1.bf16.msra.mxu0 0
      %877 = vmatprep.subr.bf16.mxu0 0
      %878 = vmatpush1.bf16.msra.mxu0 0
      %879 = vmatprep.subr.bf16.mxu0 0
      %880 = vmatpush1.bf16.msra.mxu0 0
      %881 = vmatprep.subr.bf16.mxu0 0
      %882 = vmatpush1.bf16.msra.mxu0 0
      %883 = vmatprep.subr.bf16.mxu0 0
      %884 = vmatpush1.bf16.msra.mxu0 0
      %885 = vmatprep.mubr.bf16.mxu0 0
      %886 = vmatmul.mubr.bf16.gmra.mrb[0].mxu0 %v399
      %v887 = vpop.f32.mrb[0].mxu0
      %v888 = vadd.f32 %v337, %v887
      %v889 = vpop.f32.mrb[0].mxu0
      %v890 = vadd.f32 %v341, %v889
      %v891 = vpop.f32.mrb[0].mxu0
      %v892 = vadd.f32 %v337, %v891
      %v893 = vpop.f32.mrb[0].mxu0
      %v894 = vadd.f32 %v341, %v893
      %895 = vmatprep.mubr.bf16.mxu0 0
      %896 = vmatmul.mubr.bf16.gmra.mrb[0].mxu0 %v400
      %v897 = vpop.f32.mrb[0].mxu0
      %v898 = vadd.f32 %v337, %v897
      %v899 = vpop.f32.mrb[0].mxu0
      %v900 = vadd.f32 %v341, %v899
      %v901 = vpop.f32.mrb[0].mxu0
      %v902 = vadd.f32 %v337, %v901
      %v903 = vpop.f32.mrb[0].mxu0
      %v904 = vadd.f32 %v341, %v903
      %905 = vmatprep.mubr.bf16.mxu0 0
      %906 = vmatmul.mubr.bf16.gmra.mrb[0].mxu0 %v401
      %v907 = vpop.f32.mrb[0].mxu0
      %v908 = vadd.f32 %v337, %v907
      %v909 = vpop.f32.mrb[0].mxu0
      %v910 = vadd.f32 %v341, %v909
      %v911 = vpop.f32.mrb[0].mxu0
      %v912 = vpop.f32.mrb[0].mxu0
      %913 = vdwg.mxu0
      %914 = vmatprep.subr.bf16.mxu0 %v680
      %915 = vmatpush1.bf16.msra.mxu0 %v679
      %916 = vmatprep.subr.bf16.mxu0 %v691
      %917 = vmatpush1.bf16.msra.mxu0 %v690
      %918 = vmatprep.subr.bf16.mxu0 %v702
      %919 = vmatpush1.bf16.msra.mxu0 %v701
      %920 = vmatprep.subr.bf16.mxu0 %v713
      %921 = vmatpush1.bf16.msra.mxu0 %v712
      %922 = vmatprep.subr.bf16.mxu0 %v724
      %923 = vmatpush1.bf16.msra.mxu0 %v723
      %924 = vmatprep.subr.bf16.mxu0 %v735
      %925 = vmatpush1.bf16.msra.mxu0 %v734
      %926 = vmatprep.subr.bf16.mxu0 %v746
      %927 = vmatpush1.bf16.msra.mxu0 %v745
      %928 = vmatprep.subr.bf16.mxu0 %v757
      %929 = vmatpush1.bf16.msra.mxu0 %v756
      %930 = vmatprep.subr.bf16.mxu0 0
      %931 = vmatpush1.bf16.msra.mxu0 0
      %932 = vmatprep.subr.bf16.mxu0 0
      %933 = vmatpush1.bf16.msra.mxu0 0
      %934 = vmatprep.subr.bf16.mxu0 0
      %935 = vmatpush1.bf16.msra.mxu0 0
      %936 = vmatprep.subr.bf16.mxu0 0
      %937 = vmatpush1.bf16.msra.mxu0 0
      %938 = vmatprep.subr.bf16.mxu0 0
      %939 = vmatpush1.bf16.msra.mxu0 0
      %940 = vmatprep.subr.bf16.mxu0 0
      %941 = vmatpush1.bf16.msra.mxu0 0
      %942 = vmatprep.subr.bf16.mxu0 0
      %943 = vmatpush1.bf16.msra.mxu0 0
      %944 = vmatprep.subr.bf16.mxu0 0
      %945 = vmatpush1.bf16.msra.mxu0 0
      %946 = vmatprep.mubr.bf16.mxu0 0
      %947 = vmatmul.mubr.bf16.gmra.mrb[0].mxu0 %v399
      %v948 = vpop.f32.mrb[0].mxu0
      %v949 = vadd.f32 %v345, %v948
      %v950 = vpop.f32.mrb[0].mxu0
      %v951 = vadd.f32 %v349, %v950
      %v952 = vpop.f32.mrb[0].mxu0
      %v953 = vadd.f32 %v345, %v952
      %v954 = vpop.f32.mrb[0].mxu0
      %v955 = vadd.f32 %v349, %v954
      %956 = vmatprep.mubr.bf16.mxu0 0
      %957 = vmatmul.mubr.bf16.gmra.mrb[0].mxu0 %v400
      %v958 = vpop.f32.mrb[0].mxu0
      %v959 = vadd.f32 %v345, %v958
      %v960 = vpop.f32.mrb[0].mxu0
      %v961 = vadd.f32 %v349, %v960
      %v962 = vpop.f32.mrb[0].mxu0
      %v963 = vadd.f32 %v345, %v962
      %v964 = vpop.f32.mrb[0].mxu0
      %v965 = vadd.f32 %v349, %v964
      %966 = vmatprep.mubr.bf16.mxu0 0
      %967 = vmatmul.mubr.bf16.gmra.mrb[0].mxu0 %v401
      %v968 = vpop.f32.mrb[0].mxu0
      %v969 = vadd.f32 %v345, %v968
      %v970 = vpop.f32.mrb[0].mxu0
      %v971 = vadd.f32 %v349, %v970
      %v972 = vpop.f32.mrb[0].mxu0
      %v973 = vpop.f32.mrb[0].mxu0
      %974 = vdwg.mxu0
      %975 = vmatprep.subr.bf16.mxu0 %v682
      %976 = vmatpush1.bf16.msra.mxu0 %v681
      %977 = vmatprep.subr.bf16.mxu0 %v693
      %978 = vmatpush1.bf16.msra.mxu0 %v692
      %979 = vmatprep.subr.bf16.mxu0 %v704
      %980 = vmatpush1.bf16.msra.mxu0 %v703
      %981 = vmatprep.subr.bf16.mxu0 %v715
      %982 = vmatpush1.bf16.msra.mxu0 %v714
      %983 = vmatprep.subr.bf16.mxu0 %v726
      %984 = vmatpush1.bf16.msra.mxu0 %v725
      %985 = vmatprep.subr.bf16.mxu0 %v737
      %986 = vmatpush1.bf16.msra.mxu0 %v736
      %987 = vmatprep.subr.bf16.mxu0 %v748
      %988 = vmatpush1.bf16.msra.mxu0 %v747
      %989 = vmatprep.subr.bf16.mxu0 %v759
      %990 = vmatpush1.bf16.msra.mxu0 %v758
      %991 = vmatprep.subr.bf16.mxu0 0
      %992 = vmatpush1.bf16.msra.mxu0 0
      %993 = vmatprep.subr.bf16.mxu0 0
      %994 = vmatpush1.bf16.msra.mxu0 0
      %995 = vmatprep.subr.bf16.mxu0 0
      %996 = vmatpush1.bf16.msra.mxu0 0
      %997 = vmatprep.subr.bf16.mxu0 0
      %998 = vmatpush1.bf16.msra.mxu0 0
      %999 = vmatprep.subr.bf16.mxu0 0
      %1000 = vmatpush1.bf16.msra.mxu0 0
      %1001 = vmatprep.subr.bf16.mxu0 0
      %1002 = vmatpush1.bf16.msra.mxu0 0
      %1003 = vmatprep.subr.bf16.mxu0 0
      %1004 = vmatpush1.bf16.msra.mxu0 0
      %1005 = vmatprep.subr.bf16.mxu0 0
      %1006 = vmatpush1.bf16.msra.mxu0 0
      %1007 = vmatprep.mubr.bf16.mxu0 0
      %1008 = vmatmul.mubr.bf16.gmra.mrb[0].mxu0 %v399
      %v1009 = vpop.f32.mrb[0].mxu0
      %v1010 = vadd.f32 %v353, %v1009
      %v1011 = vpop.f32.mrb[0].mxu0
      %v1012 = vadd.f32 %v357, %v1011
      %v1013 = vpop.f32.mrb[0].mxu0
      %v1014 = vadd.f32 %v353, %v1013
      %v1015 = vpop.f32.mrb[0].mxu0
      %v1016 = vadd.f32 %v357, %v1015
      %1017 = vmatprep.mubr.bf16.mxu0 0
      %1018 = vmatmul.mubr.bf16.gmra.mrb[0].mxu0 %v400
      %v1019 = vpop.f32.mrb[0].mxu0
      %v1020 = vadd.f32 %v353, %v1019
      %v1021 = vpop.f32.mrb[0].mxu0
      %v1022 = vadd.f32 %v357, %v1021
      %v1023 = vpop.f32.mrb[0].mxu0
      %v1024 = vadd.f32 %v353, %v1023
      %v1025 = vpop.f32.mrb[0].mxu0
      %v1026 = vadd.f32 %v357, %v1025
      %1027 = vmatprep.mubr.bf16.mxu0 0
      %1028 = vmatmul.mubr.bf16.gmra.mrb[0].mxu0 %v401
      %v1029 = vpop.f32.mrb[0].mxu0
      %v1030 = vadd.f32 %v353, %v1029
      %v1031 = vpop.f32.mrb[0].mxu0
      %v1032 = vadd.f32 %v357, %v1031
      %v1033 = vpop.f32.mrb[0].mxu0
      %v1034 = vpop.f32.mrb[0].mxu0
      %1035 = vdwg.mxu0
      %1036 = vmatprep.subr.bf16.mxu0 %v684
      %1037 = vmatpush1.bf16.msra.mxu0 %v683
      %1038 = vmatprep.subr.bf16.mxu0 %v695
      %1039 = vmatpush1.bf16.msra.mxu0 %v694
      %1040 = vmatprep.subr.bf16.mxu0 %v706
      %1041 = vmatpush1.bf16.msra.mxu0 %v705
      %1042 = vmatprep.subr.bf16.mxu0 %v717
      %1043 = vmatpush1.bf16.msra.mxu0 %v716
      %1044 = vmatprep.subr.bf16.mxu0 %v728
      %1045 = vmatpush1.bf16.msra.mxu0 %v727
      %1046 = vmatprep.subr.bf16.mxu0 %v739
      %1047 = vmatpush1.bf16.msra.mxu0 %v738
      %1048 = vmatprep.subr.bf16.mxu0 %v750
      %1049 = vmatpush1.bf16.msra.mxu0 %v749
      %1050 = vmatprep.subr.bf16.mxu0 %v761
      %1051 = vmatpush1.bf16.msra.mxu0 %v760
      %1052 = vmatprep.subr.bf16.mxu0 0
      %1053 = vmatpush1.bf16.msra.mxu0 0
      %1054 = vmatprep.subr.bf16.mxu0 0
      %1055 = vmatpush1.bf16.msra.mxu0 0
      %1056 = vmatprep.subr.bf16.mxu0 0
      %1057 = vmatpush1.bf16.msra.mxu0 0
      %1058 = vmatprep.subr.bf16.mxu0 0
      %1059 = vmatpush1.bf16.msra.mxu0 0
      %1060 = vmatprep.subr.bf16.mxu0 0
      %1061 = vmatpush1.bf16.msra.mxu0 0
      %1062 = vmatprep.subr.bf16.mxu0 0
      %1063 = vmatpush1.bf16.msra.mxu0 0
      %1064 = vmatprep.subr.bf16.mxu0 0
      %1065 = vmatpush1.bf16.msra.mxu0 0
      %1066 = vmatprep.subr.bf16.mxu0 0
      %1067 = vmatpush1.bf16.msra.mxu0 0
      %1068 = vmatprep.mubr.bf16.mxu0 0
      %1069 = vmatmul.mubr.bf16.gmra.mrb[0].mxu0 %v399
      %v1070 = vpop.f32.mrb[0].mxu0
      %v1071 = vadd.f32 %v361, %v1070
      %v1072 = vpop.f32.mrb[0].mxu0
      %v1073 = vadd.f32 %v365, %v1072
      %v1074 = vpop.f32.mrb[0].mxu0
      %v1075 = vadd.f32 %v361, %v1074
      %v1076 = vpop.f32.mrb[0].mxu0
      %v1077 = vadd.f32 %v365, %v1076
      %1078 = vmatprep.mubr.bf16.mxu0 0
      %1079 = vmatmul.mubr.bf16.gmra.mrb[0].mxu0 %v400
      %v1080 = vpop.f32.mrb[0].mxu0
      %v1081 = vadd.f32 %v361, %v1080
      %v1082 = vpop.f32.mrb[0].mxu0
      %v1083 = vadd.f32 %v365, %v1082
      %v1084 = vpop.f32.mrb[0].mxu0
      %v1085 = vadd.f32 %v361, %v1084
      %v1086 = vpop.f32.mrb[0].mxu0
      %v1087 = vadd.f32 %v365, %v1086
      %1088 = vmatprep.mubr.bf16.mxu0 0
      %1089 = vmatmul.mubr.bf16.gmra.mrb[0].mxu0 %v401
      %v1090 = vpop.f32.mrb[0].mxu0
      %v1091 = vadd.f32 %v361, %v1090
      %v1092 = vpop.f32.mrb[0].mxu0
      %v1093 = vadd.f32 %v365, %v1092
      %v1094 = vpop.f32.mrb[0].mxu0
      %v1095 = vpop.f32.mrb[0].mxu0
      %1096 = vdwg.mxu0
      %1097 = vmatprep.subr.bf16.mxu0 %v686
      %1098 = vmatpush1.bf16.msra.mxu0 %v685
      %1099 = vmatprep.subr.bf16.mxu0 %v697
      %1100 = vmatpush1.bf16.msra.mxu0 %v696
      %1101 = vmatprep.subr.bf16.mxu0 %v708
      %1102 = vmatpush1.bf16.msra.mxu0 %v707
      %1103 = vmatprep.subr.bf16.mxu0 %v719
      %1104 = vmatpush1.bf16.msra.mxu0 %v718
      %1105 = vmatprep.subr.bf16.mxu0 %v730
      %1106 = vmatpush1.bf16.msra.mxu0 %v729
      %1107 = vmatprep.subr.bf16.mxu0 %v741
      %1108 = vmatpush1.bf16.msra.mxu0 %v740
      %1109 = vmatprep.subr.bf16.mxu0 %v752
      %1110 = vmatpush1.bf16.msra.mxu0 %v751
      %1111 = vmatprep.subr.bf16.mxu0 %v763
      %1112 = vmatpush1.bf16.msra.mxu0 %v762
      %1113 = vmatprep.subr.bf16.mxu0 0
      %1114 = vmatpush1.bf16.msra.mxu0 0
      %1115 = vmatprep.subr.bf16.mxu0 0
      %1116 = vmatpush1.bf16.msra.mxu0 0
      %1117 = vmatprep.subr.bf16.mxu0 0
      %1118 = vmatpush1.bf16.msra.mxu0 0
      %1119 = vmatprep.subr.bf16.mxu0 0
      %1120 = vmatpush1.bf16.msra.mxu0 0
      %1121 = vmatprep.subr.bf16.mxu0 0
      %1122 = vmatpush1.bf16.msra.mxu0 0
      %1123 = vmatprep.subr.bf16.mxu0 0
      %1124 = vmatpush1.bf16.msra.mxu0 0
      %1125 = vmatprep.subr.bf16.mxu0 0
      %1126 = vmatpush1.bf16.msra.mxu0 0
      %1127 = vmatprep.subr.bf16.mxu0 0
      %1128 = vmatpush1.bf16.msra.mxu0 0
      %1129 = vmatprep.mubr.bf16.mxu0 0
      %1130 = vmatmul.mubr.bf16.gmra.mrb[0].mxu0 %v399
      %v1131 = vpop.f32.mrb[0].mxu0
      %v1132 = vadd.f32 %v369, %v1131
      %v1133 = vpop.f32.mrb[0].mxu0
      %v1134 = vadd.f32 %v373, %v1133
      %v1135 = vpop.f32.mrb[0].mxu0
      %v1136 = vadd.f32 %v369, %v1135
      %v1137 = vpop.f32.mrb[0].mxu0
      %v1138 = vadd.f32 %v373, %v1137
      %1139 = vmatprep.mubr.bf16.mxu0 0
      %1140 = vmatmul.mubr.bf16.gmra.mrb[0].mxu0 %v400
      %v1141 = vpop.f32.mrb[0].mxu0
      %v1142 = vadd.f32 %v369, %v1141
      %v1143 = vpop.f32.mrb[0].mxu0
      %v1144 = vadd.f32 %v373, %v1143
      %v1145 = vpop.f32.mrb[0].mxu0
      %v1146 = vadd.f32 %v369, %v1145
      %v1147 = vpop.f32.mrb[0].mxu0
      %v1148 = vadd.f32 %v373, %v1147
      %1149 = vmatprep.mubr.bf16.mxu0 0
      %1150 = vmatmul.mubr.bf16.gmra.mrb[0].mxu0 %v401
      %v1151 = vpop.f32.mrb[0].mxu0
      %v1152 = vadd.f32 %v369, %v1151
      %v1153 = vpop.f32.mrb[0].mxu0
      %v1154 = vadd.f32 %v373, %v1153
      %v1155 = vpop.f32.mrb[0].mxu0
      %v1156 = vpop.f32.mrb[0].mxu0
      %1157 = vdwg.mxu0
      %1158 = vmatprep.subr.bf16.mxu0 0
      %1159 = vmatpush1.bf16.msra.mxu0 %v687
      %1160 = vmatprep.subr.bf16.mxu0 0
      %1161 = vmatpush1.bf16.msra.mxu0 %v698
      %1162 = vmatprep.subr.bf16.mxu0 0
      %1163 = vmatpush1.bf16.msra.mxu0 %v709
      %1164 = vmatprep.subr.bf16.mxu0 0
      %1165 = vmatpush1.bf16.msra.mxu0 %v720
      %1166 = vmatprep.subr.bf16.mxu0 0
      %1167 = vmatpush1.bf16.msra.mxu0 %v731
      %1168 = vmatprep.subr.bf16.mxu0 0
      %1169 = vmatpush1.bf16.msra.mxu0 %v742
      %1170 = vmatprep.subr.bf16.mxu0 0
      %1171 = vmatpush1.bf16.msra.mxu0 %v753
      %1172 = vmatprep.subr.bf16.mxu0 0
      %1173 = vmatpush1.bf16.msra.mxu0 %v764
      %1174 = vmatprep.subr.bf16.mxu0 0
      %1175 = vmatpush1.bf16.msra.mxu0 0
      %1176 = vmatprep.subr.bf16.mxu0 0
      %1177 = vmatpush1.bf16.msra.mxu0 0
      %1178 = vmatprep.subr.bf16.mxu0 0
      %1179 = vmatpush1.bf16.msra.mxu0 0
      %1180 = vmatprep.subr.bf16.mxu0 0
      %1181 = vmatpush1.bf16.msra.mxu0 0
      %1182 = vmatprep.subr.bf16.mxu0 0
      %1183 = vmatpush1.bf16.msra.mxu0 0
      %1184 = vmatprep.subr.bf16.mxu0 0
      %1185 = vmatpush1.bf16.msra.mxu0 0
      %1186 = vmatprep.subr.bf16.mxu0 0
      %1187 = vmatpush1.bf16.msra.mxu0 0
      %1188 = vmatprep.subr.bf16.mxu0 0
      %1189 = vmatpush1.bf16.msra.mxu0 0
      %1190 = vmatprep.mubr.bf16.mxu0 0
      %1191 = vmatmul.mubr.bf16.gmra.mrb[0].mxu0 %v399
      %v1192 = vpop.f32.mrb[0].mxu0
      %v1193 = vadd.f32 %v377, %v1192
      %v1194 = vpop.f32.mrb[0].mxu0
      %v1195 = vpop.f32.mrb[0].mxu0
      %v1196 = vadd.f32 %v377, %v1195
      %v1197 = vpop.f32.mrb[0].mxu0
      %1198 = vmatprep.mubr.bf16.mxu0 0
      %1199 = vmatmul.mubr.bf16.gmra.mrb[0].mxu0 %v400
      %v1200 = vpop.f32.mrb[0].mxu0
      %v1201 = vadd.f32 %v377, %v1200
      %v1202 = vpop.f32.mrb[0].mxu0
      %v1203 = vpop.f32.mrb[0].mxu0
      %v1204 = vadd.f32 %v377, %v1203
      %v1205 = vpop.f32.mrb[0].mxu0
      %1206 = vmatprep.mubr.bf16.mxu0 0
      %1207 = vmatmul.mubr.bf16.gmra.mrb[0].mxu0 %v401
      %v1208 = vpop.f32.mrb[0].mxu0
      %v1209 = vadd.f32 %v377, %v1208
      %v1210 = vpop.f32.mrb[0].mxu0
      %v1211 = vpop.f32.mrb[0].mxu0
      %v1212 = vpop.f32.mrb[0].mxu0
      %1213 = vdwg.mxu0
      %v1214 = vmul.f32 %v888, %v888
      %v1215 = vmul.f32 %v892, %v892
      %v1216 = vmul.f32 %v898, %v898
      %v1217 = vmul.f32 %v902, %v902
      %v1218 = vmul.f32 %v908, %v908
      %v1219 = vmul.f32 %v890, %v890
      %v1220 = vmul.f32 %v894, %v894
      %v1221 = vmul.f32 %v900, %v900
      %v1222 = vmul.f32 %v904, %v904
      %v1223 = vmul.f32 %v910, %v910
      %v1224 = vadd.f32 %v1214, %v1219
      %v1225 = vadd.f32 %v1215, %v1220
      %v1226 = vadd.f32 %v1216, %v1221
      %v1227 = vadd.f32 %v1217, %v1222
      %v1228 = vadd.f32 %v1218, %v1223
      %v1229 = vrsqrt.pop %v1224
      %v1230 = vmul.f32 %v1224, %v1229
      %vm1231 = vcmp.eq.f32.partialorder %v1224, inf
      %v1232 = vsel %vm1231, %v1224, %v1230
      %vm1233 = vcmp.eq.f32.partialorder %v1224, 0.0
      %v1234 = vand.u32 %v1224, 2147483648
      %v1235 = vsel %vm1233, %v1234, %v1232
      %v1236 = vrsqrt.pop %v1225
      %v1237 = vmul.f32 %v1225, %v1236
      %vm1238 = vcmp.eq.f32.partialorder %v1225, inf
      %v1239 = vsel %vm1238, %v1225, %v1237
      %vm1240 = vcmp.eq.f32.partialorder %v1225, 0.0
      %v1241 = vand.u32 %v1225, 2147483648
      %v1242 = vsel %vm1240, %v1241, %v1239
      %v1243 = vrsqrt.pop %v1226
      %v1244 = vmul.f32 %v1226, %v1243
      %vm1245 = vcmp.eq.f32.partialorder %v1226, inf
      %v1246 = vsel %vm1245, %v1226, %v1244
      %vm1247 = vcmp.eq.f32.partialorder %v1226, 0.0
      %v1248 = vand.u32 %v1226, 2147483648
      %v1249 = vsel %vm1247, %v1248, %v1246
      %v1250 = vrsqrt.pop %v1227
      %v1251 = vmul.f32 %v1227, %v1250
      %vm1252 = vcmp.eq.f32.partialorder %v1227, inf
      %v1253 = vsel %vm1252, %v1227, %v1251
      %vm1254 = vcmp.eq.f32.partialorder %v1227, 0.0
      %v1255 = vand.u32 %v1227, 2147483648
      %v1256 = vsel %vm1254, %v1255, %v1253
      %v1257 = vrsqrt.pop %v1228
      %v1258 = vmul.f32 %v1228, %v1257
      %vm1259 = vcmp.eq.f32.partialorder %v1228, inf
      %v1260 = vsel %vm1259, %v1228, %v1258
      %vm1261 = vcmp.eq.f32.partialorder %v1228, 0.0
      %v1262 = vand.u32 %v1228, 2147483648
      %v1263 = vsel %vm1261, %v1262, %v1260
      %v1264 = vmul.f32 %v949, %v949
      %v1265 = vmul.f32 %v953, %v953
      %v1266 = vmul.f32 %v959, %v959
      %v1267 = vmul.f32 %v963, %v963
      %v1268 = vmul.f32 %v969, %v969
      %v1269 = vmul.f32 %v951, %v951
      %v1270 = vmul.f32 %v955, %v955
      %v1271 = vmul.f32 %v961, %v961
      %v1272 = vmul.f32 %v965, %v965
      %v1273 = vmul.f32 %v971, %v971
      %v1274 = vadd.f32 %v1264, %v1269
      %v1275 = vadd.f32 %v1265, %v1270
      %v1276 = vadd.f32 %v1266, %v1271
      %v1277 = vadd.f32 %v1267, %v1272
      %v1278 = vadd.f32 %v1268, %v1273
      %v1279 = vrsqrt.pop %v1274
      %v1280 = vmul.f32 %v1274, %v1279
      %vm1281 = vcmp.eq.f32.partialorder %v1274, inf
      %v1282 = vsel %vm1281, %v1274, %v1280
      %vm1283 = vcmp.eq.f32.partialorder %v1274, 0.0
      %v1284 = vand.u32 %v1274, 2147483648
      %v1285 = vsel %vm1283, %v1284, %v1282
      %v1286 = vrsqrt.pop %v1275
      %v1287 = vmul.f32 %v1275, %v1286
      %vm1288 = vcmp.eq.f32.partialorder %v1275, inf
      %v1289 = vsel %vm1288, %v1275, %v1287
      %vm1290 = vcmp.eq.f32.partialorder %v1275, 0.0
      %v1291 = vand.u32 %v1275, 2147483648
      %v1292 = vsel %vm1290, %v1291, %v1289
      %v1293 = vrsqrt.pop %v1276
      %v1294 = vmul.f32 %v1276, %v1293
      %vm1295 = vcmp.eq.f32.partialorder %v1276, inf
      %v1296 = vsel %vm1295, %v1276, %v1294
      %vm1297 = vcmp.eq.f32.partialorder %v1276, 0.0
      %v1298 = vand.u32 %v1276, 2147483648
      %v1299 = vsel %vm1297, %v1298, %v1296
      %v1300 = vrsqrt.pop %v1277
      %v1301 = vmul.f32 %v1277, %v1300
      %vm1302 = vcmp.eq.f32.partialorder %v1277, inf
      %v1303 = vsel %vm1302, %v1277, %v1301
      %vm1304 = vcmp.eq.f32.partialorder %v1277, 0.0
      %v1305 = vand.u32 %v1277, 2147483648
      %v1306 = vsel %vm1304, %v1305, %v1303
      %v1307 = vrsqrt.pop %v1278
      %v1308 = vmul.f32 %v1278, %v1307
      %vm1309 = vcmp.eq.f32.partialorder %v1278, inf
      %v1310 = vsel %vm1309, %v1278, %v1308
      %vm1311 = vcmp.eq.f32.partialorder %v1278, 0.0
      %v1312 = vand.u32 %v1278, 2147483648
      %v1313 = vsel %vm1311, %v1312, %v1310
      %v1314 = vmul.f32 %v1010, %v1010
      %v1315 = vmul.f32 %v1014, %v1014
      %v1316 = vmul.f32 %v1020, %v1020
      %v1317 = vmul.f32 %v1024, %v1024
      %v1318 = vmul.f32 %v1030, %v1030
      %v1319 = vmul.f32 %v1012, %v1012
      %v1320 = vmul.f32 %v1016, %v1016
      %v1321 = vmul.f32 %v1022, %v1022
      %v1322 = vmul.f32 %v1026, %v1026
      %v1323 = vmul.f32 %v1032, %v1032
      %v1324 = vadd.f32 %v1314, %v1319
      %v1325 = vadd.f32 %v1315, %v1320
      %v1326 = vadd.f32 %v1316, %v1321
      %v1327 = vadd.f32 %v1317, %v1322
      %v1328 = vadd.f32 %v1318, %v1323
      %v1329 = vrsqrt.pop %v1324
      %v1330 = vmul.f32 %v1324, %v1329
      %vm1331 = vcmp.eq.f32.partialorder %v1324, inf
      %v1332 = vsel %vm1331, %v1324, %v1330
      %vm1333 = vcmp.eq.f32.partialorder %v1324, 0.0
      %v1334 = vand.u32 %v1324, 2147483648
      %v1335 = vsel %vm1333, %v1334, %v1332
      %v1336 = vrsqrt.pop %v1325
      %v1337 = vmul.f32 %v1325, %v1336
      %vm1338 = vcmp.eq.f32.partialorder %v1325, inf
      %v1339 = vsel %vm1338, %v1325, %v1337
      %vm1340 = vcmp.eq.f32.partialorder %v1325, 0.0
      %v1341 = vand.u32 %v1325, 2147483648
      %v1342 = vsel %vm1340, %v1341, %v1339
      %v1343 = vrsqrt.pop %v1326
      %v1344 = vmul.f32 %v1326, %v1343
      %vm1345 = vcmp.eq.f32.partialorder %v1326, inf
      %v1346 = vsel %vm1345, %v1326, %v1344
      %vm1347 = vcmp.eq.f32.partialorder %v1326, 0.0
      %v1348 = vand.u32 %v1326, 2147483648
      %v1349 = vsel %vm1347, %v1348, %v1346
      %v1350 = vrsqrt.pop %v1327
      %v1351 = vmul.f32 %v1327, %v1350
      %vm1352 = vcmp.eq.f32.partialorder %v1327, inf
      %v1353 = vsel %vm1352, %v1327, %v1351
      %vm1354 = vcmp.eq.f32.partialorder %v1327, 0.0
      %v1355 = vand.u32 %v1327, 2147483648
      %v1356 = vsel %vm1354, %v1355, %v1353
      %v1357 = vrsqrt.pop %v1328
      %v1358 = vmul.f32 %v1328, %v1357
      %vm1359 = vcmp.eq.f32.partialorder %v1328, inf
      %v1360 = vsel %vm1359, %v1328, %v1358
      %vm1361 = vcmp.eq.f32.partialorder %v1328, 0.0
      %v1362 = vand.u32 %v1328, 2147483648
      %v1363 = vsel %vm1361, %v1362, %v1360
      %v1364 = vsub.f32 0.0, %v1071
      %v1365 = vsub.f32 0.0, %v1075
      %v1366 = vsub.f32 0.0, %v1081
      %v1367 = vsub.f32 0.0, %v1085
      %v1368 = vsub.f32 0.0, %v1091
      %v1369 = vmul.f32 %v1364, 1.442695
      %v1370 = vpow.pop %v1369
      %v1371 = vmul.f32 %v1365, 1.442695
      %v1372 = vpow.pop %v1371
      %v1373 = vmul.f32 %v1366, 1.442695
      %v1374 = vpow.pop %v1373
      %v1375 = vmul.f32 %v1367, 1.442695
      %v1376 = vpow.pop %v1375
      %v1377 = vmul.f32 %v1368, 1.442695
      %v1378 = vpow.pop %v1377
      %v1379 = vadd.f32 %v1370, 1.0
      %v1380 = vadd.f32 %v1372, 1.0
      %v1381 = vadd.f32 %v1374, 1.0
      %v1382 = vadd.f32 %v1376, 1.0
      %v1383 = vadd.f32 %v1378, 1.0
      %v1384 = vrcp.pop %v1379
      %v1385 = vmul.f32 1.0, %v1384
      %v1386 = vrcp.pop %v1380
      %v1387 = vmul.f32 1.0, %v1386
      %v1388 = vrcp.pop %v1381
      %v1389 = vmul.f32 1.0, %v1388
      %v1390 = vrcp.pop %v1382
      %v1391 = vmul.f32 1.0, %v1390
      %v1392 = vrcp.pop %v1383
      %v1393 = vmul.f32 1.0, %v1392
      %v1394 = vmul.f32 %v1285, %v1385
      %v1395 = vmul.f32 %v1292, %v1387
      %v1396 = vmul.f32 %v1299, %v1389
      %v1397 = vmul.f32 %v1306, %v1391
      %v1398 = vmul.f32 %v1313, %v1393
      %v1399 = vsub.f32 0.0, %v1073
      %v1400 = vsub.f32 0.0, %v1077
      %v1401 = vsub.f32 0.0, %v1083
      %v1402 = vsub.f32 0.0, %v1087
      %v1403 = vsub.f32 0.0, %v1093
      %v1404 = vmul.f32 %v1399, 1.442695
      %v1405 = vpow.pop %v1404
      %v1406 = vmul.f32 %v1400, 1.442695
      %v1407 = vpow.pop %v1406
      %v1408 = vmul.f32 %v1401, 1.442695
      %v1409 = vpow.pop %v1408
      %v1410 = vmul.f32 %v1402, 1.442695
      %v1411 = vpow.pop %v1410
      %v1412 = vmul.f32 %v1403, 1.442695
      %v1413 = vpow.pop %v1412
      %v1414 = vadd.f32 %v1405, 1.0
      %v1415 = vadd.f32 %v1407, 1.0
      %v1416 = vadd.f32 %v1409, 1.0
      %v1417 = vadd.f32 %v1411, 1.0
      %v1418 = vadd.f32 %v1413, 1.0
      %v1419 = vrcp.pop %v1414
      %v1420 = vmul.f32 1.0, %v1419
      %v1421 = vrcp.pop %v1415
      %v1422 = vmul.f32 1.0, %v1421
      %v1423 = vrcp.pop %v1416
      %v1424 = vmul.f32 1.0, %v1423
      %v1425 = vrcp.pop %v1417
      %v1426 = vmul.f32 1.0, %v1425
      %v1427 = vrcp.pop %v1418
      %v1428 = vmul.f32 1.0, %v1427
      %v1429 = vmul.f32 %v1235, %v1420
      %v1430 = vmul.f32 %v1242, %v1422
      %v1431 = vmul.f32 %v1249, %v1424
      %v1432 = vmul.f32 %v1256, %v1426
      %v1433 = vmul.f32 %v1263, %v1428
      %v1434 = vadd.f32 %v1394, %v1429
      %v1435 = vadd.f32 %v1395, %v1430
      %v1436 = vadd.f32 %v1396, %v1431
      %v1437 = vadd.f32 %v1397, %v1432
      %v1438 = vadd.f32 %v1398, %v1433
      %v1439 = vsub.f32 0.0, %v1132
      %v1440 = vsub.f32 0.0, %v1136
      %v1441 = vsub.f32 0.0, %v1142
      %v1442 = vsub.f32 0.0, %v1146
      %v1443 = vsub.f32 0.0, %v1152
      %v1444 = vmul.f32 %v1439, 1.442695
      %v1445 = vpow.pop %v1444
      %v1446 = vmul.f32 %v1440, 1.442695
      %v1447 = vpow.pop %v1446
      %v1448 = vmul.f32 %v1441, 1.442695
      %v1449 = vpow.pop %v1448
      %v1450 = vmul.f32 %v1442, 1.442695
      %v1451 = vpow.pop %v1450
      %v1452 = vmul.f32 %v1443, 1.442695
      %v1453 = vpow.pop %v1452
      %v1454 = vadd.f32 %v1445, 1.0
      %v1455 = vadd.f32 %v1447, 1.0
      %v1456 = vadd.f32 %v1449, 1.0
      %v1457 = vadd.f32 %v1451, 1.0
      %v1458 = vadd.f32 %v1453, 1.0
      %v1459 = vrcp.pop %v1454
      %v1460 = vmul.f32 1.0, %v1459
      %v1461 = vrcp.pop %v1455
      %v1462 = vmul.f32 1.0, %v1461
      %v1463 = vrcp.pop %v1456
      %v1464 = vmul.f32 1.0, %v1463
      %v1465 = vrcp.pop %v1457
      %v1466 = vmul.f32 1.0, %v1465
      %v1467 = vrcp.pop %v1458
      %v1468 = vmul.f32 1.0, %v1467
      %v1469 = vmul.f32 %v1335, %v1460
      %v1470 = vmul.f32 %v1342, %v1462
      %v1471 = vmul.f32 %v1349, %v1464
      %v1472 = vmul.f32 %v1356, %v1466
      %v1473 = vmul.f32 %v1363, %v1468
      %v1474 = vadd.f32 %v1434, %v1469
      %v1475 = vadd.f32 %v1435, %v1470
      %v1476 = vadd.f32 %v1436, %v1471
      %v1477 = vadd.f32 %v1437, %v1472
      %v1478 = vadd.f32 %v1438, %v1473
      %v1479 = vmul.f32 %v1134, %v1134
      %v1480 = vmul.f32 %v1138, %v1138
      %v1481 = vmul.f32 %v1144, %v1144
      %v1482 = vmul.f32 %v1148, %v1148
      %v1483 = vmul.f32 %v1154, %v1154
      %v1484 = vmul.f32 %v1193, %v1193
      %v1485 = vmul.f32 %v1196, %v1196
      %v1486 = vmul.f32 %v1201, %v1201
      %v1487 = vmul.f32 %v1204, %v1204
      %v1488 = vmul.f32 %v1209, %v1209
      %v1489 = vadd.f32 %v1479, %v1484
      %v1490 = vadd.f32 %v1480, %v1485
      %v1491 = vadd.f32 %v1481, %v1486
      %v1492 = vadd.f32 %v1482, %v1487
      %v1493 = vadd.f32 %v1483, %v1488
      %v1494 = vmax.f32 %v1489, 1e-10
      %v1495 = vmax.f32 %v1490, 1e-10
      %v1496 = vmax.f32 %v1491, 1e-10
      %v1497 = vmax.f32 %v1492, 1e-10
      %v1498 = vmax.f32 %v1493, 1e-10
      %v1499 = vrsqrt.pop %v1494
      %v1500 = vmul.f32 %v1494, %v1499
      %vm1501 = vcmp.eq.f32.partialorder %v1494, inf
      %v1502 = vsel %vm1501, %v1494, %v1500
      %vm1503 = vcmp.eq.f32.partialorder %v1494, 0.0
      %v1504 = vand.u32 %v1494, 2147483648
      %v1505 = vsel %vm1503, %v1504, %v1502
      %v1506 = vrsqrt.pop %v1495
      %v1507 = vmul.f32 %v1495, %v1506
      %vm1508 = vcmp.eq.f32.partialorder %v1495, inf
      %v1509 = vsel %vm1508, %v1495, %v1507
      %vm1510 = vcmp.eq.f32.partialorder %v1495, 0.0
      %v1511 = vand.u32 %v1495, 2147483648
      %v1512 = vsel %vm1510, %v1511, %v1509
      %v1513 = vrsqrt.pop %v1496
      %v1514 = vmul.f32 %v1496, %v1513
      %vm1515 = vcmp.eq.f32.partialorder %v1496, inf
      %v1516 = vsel %vm1515, %v1496, %v1514
      %vm1517 = vcmp.eq.f32.partialorder %v1496, 0.0
      %v1518 = vand.u32 %v1496, 2147483648
      %v1519 = vsel %vm1517, %v1518, %v1516
      %v1520 = vrsqrt.pop %v1497
      %v1521 = vmul.f32 %v1497, %v1520
      %vm1522 = vcmp.eq.f32.partialorder %v1497, inf
      %v1523 = vsel %vm1522, %v1497, %v1521
      %vm1524 = vcmp.eq.f32.partialorder %v1497, 0.0
      %v1525 = vand.u32 %v1497, 2147483648
      %v1526 = vsel %vm1524, %v1525, %v1523
      %v1527 = vrsqrt.pop %v1498
      %v1528 = vmul.f32 %v1498, %v1527
      %vm1529 = vcmp.eq.f32.partialorder %v1498, inf
      %v1530 = vsel %vm1529, %v1498, %v1528
      %vm1531 = vcmp.eq.f32.partialorder %v1498, 0.0
      %v1532 = vand.u32 %v1498, 2147483648
      %v1533 = vsel %vm1531, %v1532, %v1530
      %v1534 = vadd.f32 %v1134, 1e-10
      %v1535 = vadd.f32 %v1138, 1e-10
      %v1536 = vadd.f32 %v1144, 1e-10
      %v1537 = vadd.f32 %v1148, 1e-10
      %v1538 = vadd.f32 %v1154, 1e-10
      %v1539 = vadd.f32 %v1193, 1e-10
      %v1540 = vadd.f32 %v1196, 1e-10
      %v1541 = vadd.f32 %v1201, 1e-10
      %v1542 = vadd.f32 %v1204, 1e-10
      %v1543 = vadd.f32 %v1209, 1e-10
      %v1544 = vmul.f32 %v1534, %v1534
      %v1545 = vmul.f32 %v1535, %v1535
      %v1546 = vmul.f32 %v1536, %v1536
      %v1547 = vmul.f32 %v1537, %v1537
      %v1548 = vmul.f32 %v1538, %v1538
      %v1549 = vmul.f32 %v1539, %v1539
      %v1550 = vmul.f32 %v1540, %v1540
      %v1551 = vmul.f32 %v1541, %v1541
      %v1552 = vmul.f32 %v1542, %v1542
      %v1553 = vmul.f32 %v1543, %v1543
      %v1554 = vadd.f32 %v1544, %v1549
      %v1555 = vadd.f32 %v1545, %v1550
      %v1556 = vadd.f32 %v1546, %v1551
      %v1557 = vadd.f32 %v1547, %v1552
      %v1558 = vadd.f32 %v1548, %v1553
      %v1559 = vmax.f32 %v1554, 1e-30
      %v1560 = vmax.f32 %v1555, 1e-30
      %v1561 = vmax.f32 %v1556, 1e-30
      %v1562 = vmax.f32 %v1557, 1e-30
      %v1563 = vmax.f32 %v1558, 1e-30
      %v1564 = vrsqrt.pop %v1559
      %v1565 = vrsqrt.pop %v1560
      %v1566 = vrsqrt.pop %v1561
      %v1567 = vrsqrt.pop %v1562
      %v1568 = vrsqrt.pop %v1563
      %v1569 = vmul.f32 %v1534, %v1564
      %v1570 = vmul.f32 %v1535, %v1565
      %v1571 = vmul.f32 %v1536, %v1566
      %v1572 = vmul.f32 %v1537, %v1567
      %v1573 = vmul.f32 %v1538, %v1568
      %v1574 = vmul.f32 %v1539, %v1564
      %v1575 = vmul.f32 %v1540, %v1565
      %v1576 = vmul.f32 %v1541, %v1566
      %v1577 = vmul.f32 %v1542, %v1567
      %v1578 = vmul.f32 %v1543, %v1568
      %v1579 = vmax.f32 %v1224, 1e-30
      %v1580 = vmax.f32 %v1225, 1e-30
      %v1581 = vmax.f32 %v1226, 1e-30
      %v1582 = vmax.f32 %v1227, 1e-30
      %v1583 = vmax.f32 %v1228, 1e-30
      %v1584 = vrsqrt.pop %v1579
      %v1585 = vrsqrt.pop %v1580
      %v1586 = vrsqrt.pop %v1581
      %v1587 = vrsqrt.pop %v1582
      %v1588 = vrsqrt.pop %v1583
      %v1589 = vmul.f32 %v888, %v1584
      %v1590 = vmul.f32 %v892, %v1585
      %v1591 = vmul.f32 %v898, %v1586
      %v1592 = vmul.f32 %v902, %v1587
      %v1593 = vmul.f32 %v908, %v1588
      %v1594 = vmul.f32 %v890, %v1584
      %v1595 = vmul.f32 %v894, %v1585
      %v1596 = vmul.f32 %v900, %v1586
      %v1597 = vmul.f32 %v904, %v1587
      %v1598 = vmul.f32 %v910, %v1588
      %v1599 = vtanh.pop %v1505
      %v1600 = vtanh.pop %v1512
      %v1601 = vtanh.pop %v1519
      %v1602 = vtanh.pop %v1526
      %v1603 = vtanh.pop %v1533
      %v1604 = vmul.f32 %v1474, %v1599
      %v1605 = vmul.f32 %v1475, %v1600
      %v1606 = vmul.f32 %v1476, %v1601
      %v1607 = vmul.f32 %v1477, %v1602
      %v1608 = vmul.f32 %v1478, %v1603
      %v1609 = vmul.f32 %v1589, %v1569
      %v1610 = vmul.f32 %v1590, %v1570
      %v1611 = vmul.f32 %v1591, %v1571
      %v1612 = vmul.f32 %v1592, %v1572
      %v1613 = vmul.f32 %v1593, %v1573
      %v1614 = vmul.f32 %v1594, %v1574
      %v1615 = vmul.f32 %v1595, %v1575
      %v1616 = vmul.f32 %v1596, %v1576
      %v1617 = vmul.f32 %v1597, %v1577
      %v1618 = vmul.f32 %v1598, %v1578
      %v1619 = vsub.f32 %v1609, %v1614
      %v1620 = vsub.f32 %v1610, %v1615
      %v1621 = vsub.f32 %v1611, %v1616
      %v1622 = vsub.f32 %v1612, %v1617
      %v1623 = vsub.f32 %v1613, %v1618
      %v1624 = vmul.f32 %v1604, %v1619
      %v1625 = vmul.f32 %v1605, %v1620
      %v1626 = vmul.f32 %v1606, %v1621
      %v1627 = vmul.f32 %v1607, %v1622
      %v1628 = vmul.f32 %v1608, %v1623
      %v1629 = vmul.f32 %v1594, %v1569
      %v1630 = vmul.f32 %v1595, %v1570
      %v1631 = vmul.f32 %v1596, %v1571
      %v1632 = vmul.f32 %v1597, %v1572
      %v1633 = vmul.f32 %v1598, %v1573
      %v1634 = vmul.f32 %v1589, %v1574
      %v1635 = vmul.f32 %v1590, %v1575
      %v1636 = vmul.f32 %v1591, %v1576
      %v1637 = vmul.f32 %v1592, %v1577
      %v1638 = vmul.f32 %v1593, %v1578
      %v1639 = vadd.f32 %v1629, %v1634
      %v1640 = vadd.f32 %v1630, %v1635
      %v1641 = vadd.f32 %v1631, %v1636
      %v1642 = vadd.f32 %v1632, %v1637
      %v1643 = vadd.f32 %v1633, %v1638
      %v1644 = vmul.f32 %v1604, %v1639
      %v1645 = vmul.f32 %v1605, %v1640
      %v1646 = vmul.f32 %v1606, %v1641
      %v1647 = vmul.f32 %v1607, %v1642
      %v1648 = vmul.f32 %v1608, %v1643
      %v1649 = vld [vmem:[%s3] sm:$0xff]
      %v1650 = vld [vmem:[%s3 + $0x8] sm:$0xff]
      %v1651 = vld [vmem:[%s3 + $0x10] sm:$0xff]
      %v1652 = vld [vmem:[%s3 + $0x18] sm:$0xff]
      %v1653 = vld [vmem:[%s3 + $0x20] sm:$0xff]
      %v1654 = vld [vmem:[%s3 + $0x28] sm:$0xff]
      %v1655 = vld [vmem:[%s3 + $0x30] sm:$0xff]
      %v1656 = vld [vmem:[%s3 + $0x38] sm:$0xff]
      %v1657 = vld [vmem:[%s3 + $0x40] sm:$0xff]
      %v1658 = vld [vmem:[%s3 + $0x48] sm:$0xff]
      %v1659 = vld [vmem:[%s3 + $0x50] sm:$0xff]
      %v1660 = vld [vmem:[%s3 + $0x58] sm:$0xff]
      %v1661 = vld [vmem:[%s3 + $0x60] sm:$0xff]
      %v1662 = vld [vmem:[%s3 + $0x68] sm:$0xff]
      %v1663 = vld [vmem:[%s3 + $0x70] sm:$0xff]
      %v1664 = vld [vmem:[%s3 + $0x78] sm:$0xff]
      %v1665 = vld [vmem:[%s4] sm:$0xff]
      %v1666 = vld [vmem:[%s4 + $0x8] sm:$0xff]
      %v1667 = vld [vmem:[%s4 + $0x10] sm:$0xff]
      %v1668 = vld [vmem:[%s4 + $0x18] sm:$0xff]
      %v1669 = vld [vmem:[%s4 + $0x20] sm:$0xff]
      %v1670 = vld [vmem:[%s4 + $0x28] sm:$0xff]
      %v1671 = vld [vmem:[%s4 + $0x30] sm:$0xff]
      %v1672 = vld [vmem:[%s4 + $0x38] sm:$0xff]
      %v1673 = vld [vmem:[%s4 + $0x40] sm:$0xff]
      %v1674 = vld [vmem:[%s4 + $0x48] sm:$0xff]
      %v1675 = vld [vmem:[%s4 + $0x50] sm:$0xff]
      %v1676 = vld [vmem:[%s4 + $0x58] sm:$0xff]
      %v1677 = vld [vmem:[%s4 + $0x60] sm:$0xff]
      %v1678 = vld [vmem:[%s4 + $0x68] sm:$0xff]
      %v1679 = vld [vmem:[%s4 + $0x70] sm:$0xff]
      %v1680 = vld [vmem:[%s4 + $0x78] sm:$0xff]
      %1681 = vmatprep.subr.mxu0 0.0
      %1682 = vmatpush1.msra.mxu0 %v1665
      %1683 = vmatprep.subr.mxu0 0.0
      %1684 = vmatpush1.msra.mxu0 %v1666
      %1685 = vmatprep.subr.mxu0 0.0
      %1686 = vmatpush1.msra.mxu0 %v1667
      %1687 = vmatprep.subr.mxu0 0.0
      %1688 = vmatpush1.msra.mxu0 %v1668
      %1689 = vmatprep.subr.mxu0 0.0
      %1690 = vmatpush1.msra.mxu0 %v1669
      %1691 = vmatprep.subr.mxu0 0.0
      %1692 = vmatpush1.msra.mxu0 %v1670
      %1693 = vmatprep.subr.mxu0 0.0
      %1694 = vmatpush1.msra.mxu0 %v1671
      %1695 = vmatprep.subr.mxu0 0.0
      %1696 = vmatpush1.msra.mxu0 %v1672
      %1697 = vmatprep.subr.mxu0 0.0
      %1698 = vmatpush1.msra.mxu0 %v1673
      %1699 = vmatprep.subr.mxu0 0.0
      %1700 = vmatpush1.msra.mxu0 %v1674
      %1701 = vmatprep.subr.mxu0 0.0
      %1702 = vmatpush1.msra.mxu0 %v1675
      %1703 = vmatprep.subr.mxu0 0.0
      %1704 = vmatpush1.msra.mxu0 %v1676
      %1705 = vmatprep.subr.mxu0 0.0
      %1706 = vmatpush1.msra.mxu0 %v1677
      %1707 = vmatprep.subr.mxu0 0.0
      %1708 = vmatpush1.msra.mxu0 %v1678
      %1709 = vmatprep.subr.mxu0 0.0
      %1710 = vmatpush1.msra.mxu0 %v1679
      %1711 = vmatprep.subr.mxu0 0.0
      %1712 = vmatpush1.msra.mxu0 %v1680
      %1713 = vmatprep.subr.mxu0 0.0
      %1714 = vmatpush1.msra.mxu0 0.0
      %1715 = vmatprep.subr.mxu0 0.0
      %1716 = vmatpush1.msra.mxu0 0.0
      %1717 = vmatprep.subr.mxu0 0.0
      %1718 = vmatpush1.msra.mxu0 0.0
      %1719 = vmatprep.subr.mxu0 0.0
      %1720 = vmatpush1.msra.mxu0 0.0
      %1721 = vmatprep.subr.mxu0 0.0
      %1722 = vmatpush1.msra.mxu0 0.0
      %1723 = vmatprep.subr.mxu0 0.0
      %1724 = vmatpush1.msra.mxu0 0.0
      %1725 = vmatprep.subr.mxu0 0.0
      %1726 = vmatpush1.msra.mxu0 0.0
      %1727 = vmatprep.subr.mxu0 0.0
      %1728 = vmatpush1.msra.mxu0 0.0
      %1729 = vmatprep.subr.mxu0 0.0
      %1730 = vmatpush1.msra.mxu0 0.0
      %1731 = vmatprep.subr.mxu0 0.0
      %1732 = vmatpush1.msra.mxu0 0.0
      %1733 = vmatprep.subr.mxu0 0.0
      %1734 = vmatpush1.msra.mxu0 0.0
      %1735 = vmatprep.subr.mxu0 0.0
      %1736 = vmatpush1.msra.mxu0 0.0
      %1737 = vmatprep.subr.mxu0 0.0
      %1738 = vmatpush1.msra.mxu0 0.0
      %1739 = vmatprep.subr.mxu0 0.0
      %1740 = vmatpush1.msra.mxu0 0.0
      %1741 = vmatprep.subr.mxu0 0.0
      %1742 = vmatpush1.msra.mxu0 0.0
      %1743 = vmatprep.subr.mxu0 0.0
      %1744 = vmatpush1.msra.mxu0 0.0
      %1745 = vmatprep.mubr.f32.mxu0 0.0
      %1746 = vmatmul.mubr.f32.gmra.mrb[0].mxu0 %v1644
      %v1747 = vpop.f32.mrb[0].mxu0
      %v1748 = vadd.f32 0.0, %v1747
      %v1749 = vpop.f32.mrb[0].mxu0
      %1750 = vmatprep.mubr.f32.mxu0 0.0
      %1751 = vmatmul.mubr.f32.gmra.mrb[0].mxu0 %v1645
      %v1752 = vpop.f32.mrb[0].mxu0
      %v1753 = vadd.f32 0.0, %v1752
      %v1754 = vpop.f32.mrb[0].mxu0
      %1755 = vmatprep.mubr.f32.mxu0 0.0
      %1756 = vmatmul.mubr.f32.gmra.mrb[0].mxu0 %v1646
      %v1757 = vpop.f32.mrb[0].mxu0
      %v1758 = vadd.f32 0.0, %v1757
      %v1759 = vpop.f32.mrb[0].mxu0
      %1760 = vmatprep.mubr.f32.mxu0 0.0
      %1761 = vmatmul.mubr.f32.gmra.mrb[0].mxu0 %v1647
      %v1762 = vpop.f32.mrb[0].mxu0
      %v1763 = vadd.f32 0.0, %v1762
      %v1764 = vpop.f32.mrb[0].mxu0
      %1765 = vmatprep.mubr.f32.mxu0 0.0
      %1766 = vmatmul.mubr.f32.gmra.mrb[0].mxu0 %v1648
      %v1767 = vpop.f32.mrb[0].mxu0
      %v1768 = vadd.f32 0.0, %v1767
      %v1769 = vpop.f32.mrb[0].mxu0
      %1770 = vdwg.mxu0
      %1771 = vmatprep.subr.mxu0 0.0
      %1772 = vmatpush1.msra.mxu0 %v1649
      %1773 = vmatprep.subr.mxu0 0.0
      %1774 = vmatpush1.msra.mxu0 %v1650
      %1775 = vmatprep.subr.mxu0 0.0
      %1776 = vmatpush1.msra.mxu0 %v1651
      %1777 = vmatprep.subr.mxu0 0.0
      %1778 = vmatpush1.msra.mxu0 %v1652
      %1779 = vmatprep.subr.mxu0 0.0
      %1780 = vmatpush1.msra.mxu0 %v1653
      %1781 = vmatprep.subr.mxu0 0.0
      %1782 = vmatpush1.msra.mxu0 %v1654
      %1783 = vmatprep.subr.mxu0 0.0
      %1784 = vmatpush1.msra.mxu0 %v1655
      %1785 = vmatprep.subr.mxu0 0.0
      %1786 = vmatpush1.msra.mxu0 %v1656
      %1787 = vmatprep.subr.mxu0 0.0
      %1788 = vmatpush1.msra.mxu0 %v1657
      %1789 = vmatprep.subr.mxu0 0.0
      %1790 = vmatpush1.msra.mxu0 %v1658
      %1791 = vmatprep.subr.mxu0 0.0
      %1792 = vmatpush1.msra.mxu0 %v1659
      %1793 = vmatprep.subr.mxu0 0.0
      %1794 = vmatpush1.msra.mxu0 %v1660
      %1795 = vmatprep.subr.mxu0 0.0
      %1796 = vmatpush1.msra.mxu0 %v1661
      %1797 = vmatprep.subr.mxu0 0.0
      %1798 = vmatpush1.msra.mxu0 %v1662
      %1799 = vmatprep.subr.mxu0 0.0
      %1800 = vmatpush1.msra.mxu0 %v1663
      %1801 = vmatprep.subr.mxu0 0.0
      %1802 = vmatpush1.msra.mxu0 %v1664
      %1803 = vmatprep.subr.mxu0 0.0
      %1804 = vmatpush1.msra.mxu0 0.0
      %1805 = vmatprep.subr.mxu0 0.0
      %1806 = vmatpush1.msra.mxu0 0.0
      %1807 = vmatprep.subr.mxu0 0.0
      %1808 = vmatpush1.msra.mxu0 0.0
      %1809 = vmatprep.subr.mxu0 0.0
      %1810 = vmatpush1.msra.mxu0 0.0
      %1811 = vmatprep.subr.mxu0 0.0
      %1812 = vmatpush1.msra.mxu0 0.0
      %1813 = vmatprep.subr.mxu0 0.0
      %1814 = vmatpush1.msra.mxu0 0.0
      %1815 = vmatprep.subr.mxu0 0.0
      %1816 = vmatpush1.msra.mxu0 0.0
      %1817 = vmatprep.subr.mxu0 0.0
      %1818 = vmatpush1.msra.mxu0 0.0
      %1819 = vmatprep.subr.mxu0 0.0
      %1820 = vmatpush1.msra.mxu0 0.0
      %1821 = vmatprep.subr.mxu0 0.0
      %1822 = vmatpush1.msra.mxu0 0.0
      %1823 = vmatprep.subr.mxu0 0.0
      %1824 = vmatpush1.msra.mxu0 0.0
      %1825 = vmatprep.subr.mxu0 0.0
      %1826 = vmatpush1.msra.mxu0 0.0
      %1827 = vmatprep.subr.mxu0 0.0
      %1828 = vmatpush1.msra.mxu0 0.0
      %1829 = vmatprep.subr.mxu0 0.0
      %1830 = vmatpush1.msra.mxu0 0.0
      %1831 = vmatprep.subr.mxu0 0.0
      %1832 = vmatpush1.msra.mxu0 0.0
      %1833 = vmatprep.subr.mxu0 0.0
      %1834 = vmatpush1.msra.mxu0 0.0
      %1835 = vmatprep.mubr.f32.mxu0 0.0
      %1836 = vmatmul.mubr.f32.gmra.mrb[0].mxu0 %v1624
      %v1837 = vpop.f32.mrb[0].mxu0
      %v1838 = vadd.f32 %v1748, %v1837
      %v1839 = vpop.f32.mrb[0].mxu0
      %1840 = vmatprep.mubr.f32.mxu0 0.0
      %1841 = vmatmul.mubr.f32.gmra.mrb[0].mxu0 %v1625
      %v1842 = vpop.f32.mrb[0].mxu0
      %v1843 = vadd.f32 %v1753, %v1842
      %v1844 = vpop.f32.mrb[0].mxu0
      %1845 = vmatprep.mubr.f32.mxu0 0.0
      %1846 = vmatmul.mubr.f32.gmra.mrb[0].mxu0 %v1626
      %v1847 = vpop.f32.mrb[0].mxu0
      %v1848 = vadd.f32 %v1758, %v1847
      %v1849 = vpop.f32.mrb[0].mxu0
      %1850 = vmatprep.mubr.f32.mxu0 0.0
      %1851 = vmatmul.mubr.f32.gmra.mrb[0].mxu0 %v1627
      %v1852 = vpop.f32.mrb[0].mxu0
      %v1853 = vadd.f32 %v1763, %v1852
      %v1854 = vpop.f32.mrb[0].mxu0
      %1855 = vmatprep.mubr.f32.mxu0 0.0
      %1856 = vmatmul.mubr.f32.gmra.mrb[0].mxu0 %v1628
      %v1857 = vpop.f32.mrb[0].mxu0
      %v1858 = vadd.f32 %v1768, %v1857
      %v1859 = vpop.f32.mrb[0].mxu0
      %1860 = vdwg.mxu0
      %1861 = vst [vmem:[%s226] sm:$0xff] %v1838
      %1862 = vst [vmem:[%s226 + $0x8] sm:$0xff] %v1843
      %1863 = vst [vmem:[%s226 + $0x10] sm:$0xff] %v1848
      %1864 = vst [vmem:[%s226 + $0x18] sm:$0xff] %v1853
      %1865 = vst [vmem:[%s226 + $0x20] sm:$0xff] %v1858
      %s1866 = smul.u32 5, %s16
      %p1867 = scmp.lt.s32.totalorder %s1866, 9
      %s1868 = scalar_select %p1867, %s1866, 9
      %s1869 = smul.addr %s1868, 8
      %s1870 = scalar_lea.vmem %s5, %s1869
      // Predicated region
      $region41: #{_lambda_.1} parent=39 // pred_check
        %p1871 = pneg %p144
      $region42: #{_lambda_.1} parent=39 // pred_check_branch
        %1873 = sbr.rel (%p1871) target = $region44
      $region43: #{_lambda_.1} parent=39 // pred_region
        %s1874 = smul.u32 5, %s16
      $region44: #{_lambda_.1} parent=39 // pred_fallthru
        _
    $region40: #{_lambda_.1} parent=5 // pred_fallthru
      _
    %p1875 = scmp.le.s32.totalorder 2, %s11
    // Predicated region
    $region45: #{_lambda_.1} parent=5 // pred_check
      %p1876 = pneg %p1875
    $region46: #{_lambda_.1} parent=5 // pred_check_branch
      %1878 = sbr.rel (%p1876) target = $region48
    $region47: #{_lambda_.1} parent=5 // pred_region
      %s1879 = ssub.s32 %s11, 2
      // Predicated region
      $region49: #{_lambda_.1} parent=47 // pred_check
        %p1880 = pneg %p150
      $region50: #{_lambda_.1} parent=47 // pred_check_branch
        %1882 = sbr.rel (%p1880) target = $region52
      $region51: #{_lambda_.1} parent=47 // pred_region
        %s1883 = smul.u32 5, %s17
        %p1884 = scmp.lt.s32.totalorder %s1883, 9
        %s1885 = scalar_select %p1884, %s1883, 9
        %s1886 = smul.addr %s1885, 8
        %s1887 = scalar_lea.vmem %s5, %s1886
      $region52: #{_lambda_.1} parent=47 // pred_fallthru
        _
    $region48: #{_lambda_.1} parent=5 // pred_fallthru
      _
  $region6: #{_lambda_.1} parent=0 // loop_footer
    %s15 = sadd.s32 1, %s11
  $region7: #{_lambda_.1} parent=0 // loop_footer_branch
    %10 = sbr.rel target = $region3
  $region8: #{_lambda_.1} parent=0 // loop_exit
    _

</llo_original>
